<compile_context>
chip_gen: v5e
topology: v5e:2x2
jax: 0.10.0
libtpu: 0.0.40
codegen_flags: <defaults>
</compile_context>

<pallas_src>
import math

import jax
import jax.numpy as jnp
from jax.experimental import pallas as pl
from jax.experimental.pallas import tpu as pltpu


# ----------------------------- in-kernel helpers -----------------------------

def _erf(x):
    # float32-accurate polynomial approximation of erf (Abramowitz & Stegun
    # 7.1.26, max abs error ~1.5e-7 == float32 rounding level).
    a1, a2, a3, a4, a5 = 0.254829592, -0.284496736, 1.421413741, -1.453152027, 1.061405429
    p = 0.3275911
    ax = jnp.abs(x)
    t = 1.0 / (1.0 + p * ax)
    poly = ((((a5 * t + a4) * t + a3) * t + a2) * t + a1) * t
    y = 1.0 - poly * jnp.exp(-ax * ax)          # exp -> EUP
    return jnp.where(x >= 0, y, -y)


def _sigmoid(x):
    return 1.0 / (1.0 + jnp.exp(-x))


def _gelu(x):
    # Matches FeedForward4CrossAttn.gelu: x * 0.5 * (1 + erf(x / sqrt(2)))
    return x * 0.5 * (1.0 + _erf(x * (1.0 / math.sqrt(2.0))))


def _act(x, kind):
    if kind == "gelu":
        return _gelu(x)
    if kind == "relu":
        return jnp.maximum(x, 0.0)
    if kind == "swish":
        return x * _sigmoid(x)
    if kind == "tanh":
        return jnp.tanh(x)
    if kind == "sigmoid":
        return _sigmoid(x)
    raise ValueError(f"unknown hidden_act: {kind}")


def _layernorm(x, gamma, beta, eps):
    # PyTorch nn.LayerNorm over last dim (biased variance); f32 statistics.
    mu = jnp.mean(x, axis=-1, keepdims=True)
    xc = x - mu
    var = jnp.mean(xc * xc, axis=-1, keepdims=True)
    return xc * jax.lax.rsqrt(var + eps) * gamma + beta


# --------------------------------- kernel ------------------------------------

def _build_kernel(*, n_heads, layer_norm_eps, self_attn, mxu_dtype, hidden_act,
                  weights_resident, exact_softmax):
    def kernel(*refs):
        if self_attn:
            (q_in_ref, kmask_ref,
             wqkv_ref, bqkv_ref, wo_ref, bo_ref, ln1g_ref, ln1b_ref,
             w1_ref, b1_ref, w2_ref, b2_ref, ln2g_ref, ln2b_ref,
             out_ref, x_scratch) = refs
        else:
            (q_in_ref, k_in_ref, kmask_ref,
             wq_ref, bq_ref, wkv_ref, bkv_ref, wo_ref, bo_ref, ln1g_ref, ln1b_ref,
             w1_ref, b1_ref, w2_ref, b2_ref, ln2g_ref, ln2b_ref,
             out_ref, x_scratch, k_scratch) = refs

        l = pl.program_id(1)
        bt, Sq, H = q_in_ref.shape
        hd = H // n_heads
        Sk = Sq if self_attn else k_in_ref.shape[1]
        # Resident stacked weights are indexed by the layer id; per-layer
        # pipelined blocks always present layer `l` at index 0.
        wl = l if weights_resident else 0

        # NOTE: the x_scratch / k_scratch carry is only correct because the layer
        # axis is the innermost ("arbitrary") grid axis, revisited consecutively
        # for each batch block.
        @pl.when(l == 0)
        def _():
            x_scratch[...] = q_in_ref[...].reshape(bt * Sq, H).astype(jnp.float32)
            if not self_attn:
                k_scratch[...] = k_in_ref[...].reshape(bt * Sk, H).astype(mxu_dtype)

        x = x_scratch[...]                       # (bt*Sq, H) f32 running activation
        x_m = x.astype(mxu_dtype)

        # ---- fused projections (1/sqrt(hd) folded into the Q weights/bias) ----
        if self_attn:
            qkv = jnp.dot(x_m, wqkv_ref[wl],
                          preferred_element_type=jnp.float32) + bqkv_ref[wl]
            q, k, v = qkv[:, :H], qkv[:, H:2 * H], qkv[:, 2 * H:]
        else:
            q = jnp.dot(x_m, wq_ref[wl],
                        preferred_element_type=jnp.float32) + bq_ref[wl]
            kv = jnp.dot(k_scratch[...], wkv_ref[wl],
                         preferred_element_type=jnp.float32) + bkv_ref[wl]
            k, v = kv[:, :H], kv[:, H:]

        q3 = q.astype(mxu_dtype).reshape(bt, Sq, H)
        k3 = k.astype(mxu_dtype).reshape(bt, Sk, H)
        v3 = v.astype(mxu_dtype).reshape(bt, Sk, H)
        kmask = kmask_ref[...].astype(jnp.float32)            # (bt, 1, Sk) additive

        # ---- attention: per-head scores/softmax/ctx, ONE full-K Wo matmul ----
        ctx_heads = []
        for h in range(n_heads):
            lo = h * hd
            qh = q3[:, :, lo:lo + hd]
            kh = k3[:, :, lo:lo + hd]
            vh = v3[:, :, lo:lo + hd]
            scores = jax.lax.dot_general(                      # (bt, Sq, Sk) f32
                qh, kh, (((2,), (2,)), ((0,), (0,))),
                preferred_element_type=jnp.float32) + kmask
            m = jnp.max(scores, axis=-1, keepdims=True)
            e = jnp.exp(scores - m)
            s = jnp.sum(e, axis=-1, keepdims=True)
            if exact_softmax:
                p = e / s
            else:
                p = e * pl.reciprocal(s, approx=True)          # EUP slot
            # attn_dropout: identity (eval)
            ctx_heads.append(jax.lax.dot_general(              # (bt, Sq, hd) f32
                p.astype(mxu_dtype), vh, (((2,), (1,)), ((0,), (0,))),
                preferred_element_type=jnp.float32))
        ctx = ctx_heads[0] if n_heads == 1 else jnp.concatenate(ctx_heads, axis=-1)
        attn = jnp.dot(ctx.reshape(bt * Sq, H).astype(mxu_dtype), wo_ref[wl],
                       preferred_element_type=jnp.float32) + bo_ref[wl]
        # out_dropout: identity (eval);  PyTorch: LayerNorm(dense(ctx)) + query
        attn = _layernorm(attn, ln1g_ref[wl], ln1b_ref[wl], layer_norm_eps) + x

        # ---- point-wise feed-forward ----
        h1 = jnp.dot(attn.astype(mxu_dtype), w1_ref[wl],
                     preferred_element_type=jnp.float32) + b1_ref[wl]
        h1 = _act(h1, hidden_act)
        h2 = jnp.dot(h1.astype(mxu_dtype), w2_ref[wl],
                     preferred_element_type=jnp.float32) + b2_ref[wl]
        # ffn dropout: identity (eval)
        out = _layernorm(h2, ln2g_ref[wl], ln2b_ref[wl], layer_norm_eps) + attn

        x_scratch[...] = out
        out_ref[0] = out.reshape(bt, Sq, H).astype(out_ref.dtype)

    return kernel


# -------------------------- parameter preparation ------------------------------

def fuse_layer_params(layer_params, n_heads, mxu_dtype, self_attn):
    """Stack per-layer params to [L, ...], fuse Q|K|V (self-attn) or K|V (cross),
    fold 1/sqrt(hd) into the Q weights, cast matmul weights to the MXU dtype
    (biases / LN params stay f32)."""
    H = layer_params[0]["wq"].shape[0]
    hd = H // n_heads
    scale = 1.0 / math.sqrt(hd)
    stack = lambda name: jnp.stack([p[name] for p in layer_params])
    f32 = jnp.float32

    out = dict(
        wo=stack("wo").astype(mxu_dtype), bo=stack("bo").astype(f32),
        ln1_g=stack("ln1_g").astype(f32), ln1_b=stack("ln1_b").astype(f32),
        w1=stack("w1").astype(mxu_dtype), b1=stack("b1").astype(f32),
        w2=stack("w2").astype(mxu_dtype), b2=stack("b2").astype(f32),
        ln2_g=stack("ln2_g").astype(f32), ln2_b=stack("ln2_b").astype(f32),
    )
    if self_attn:
        wqkv = jnp.concatenate([stack("wq") * scale, stack("wk"), stack("wv")], axis=-1)
        bqkv = jnp.concatenate([stack("bq") * scale, stack("bk"), stack("bv")], axis=-1)
        out.update(wqkv=wqkv.astype(mxu_dtype), bqkv=bqkv.astype(f32))
    else:
        out.update(
            wq=(stack("wq") * scale).astype(mxu_dtype),
            bq=(stack("bq") * scale).astype(f32),
            wkv=jnp.concatenate([stack("wk"), stack("wv")], axis=-1).astype(mxu_dtype),
            bkv=jnp.concatenate([stack("bk"), stack("bv")], axis=-1).astype(f32))
    return out


# -------------------------------- wrapper -------------------------------------

def cross_attention_forward(query, attention_mask, layer_params, key=None,
                            output_all_encoded_layers=True, *, n_heads,
                            layer_norm_eps=1e-12, hidden_act="gelu",
                            mxu_dtype=jnp.bfloat16, batch_block=None,
                            target_rows=512, weights_resident_bytes=8 << 20,
                            vmem_limit_bytes=None):
    """Mirrors CrossAttention.forward: returns a list of per-layer outputs.
    All n_layers are executed inside ONE pallas_call.

    attention_mask: additive key-padding mask of shape (B, Sk), (B, 1, Sk) or
    (B, 1, 1, Sk) (0 for valid key positions, large negative for padded ones),
    or None.  Query-position-dependent masks are not supported in-kernel."""
    B, Sq, H = query.shape
    L = len(layer_params)
    assert H % n_heads == 0
    self_attn = key is None
    Sk = Sq if self_attn else key.shape[1]
    inner = layer_params[0]["w1"].shape[-1]
    exact_softmax = jnp.dtype(mxu_dtype) == jnp.dtype(jnp.float32)

    # ---- key-padding additive mask, (B, 1, Sk) ----
    if attention_mask is None:
        kmask = jnp.zeros((B, 1, Sk), jnp.float32)
    else:
        am = jnp.asarray(attention_mask, jnp.float32)
        if am.ndim == 4 and am.shape[2] != 1:
            # TODO(synk): query-position-dependent (B,1,Sq,Sk) additive masks.
            raise NotImplementedError(
                "only key-padding (query-independent) additive masks are supported")
        kmask = am.reshape(B, -1, Sk)[:, :1, :]

    fp = fuse_layer_params(layer_params, n_heads, mxu_dtype, self_attn)

    # ---- batch block: ~256-512 MXU rows / step, but keep >= 2 batch blocks so
    # the "parallel" axis can shard across v7x's 2 TensorCores. ----
    if batch_block is None:
        bt = min(B, max(1, target_rows // max(Sq, 1)))
        if B >= 2:
            bt = min(bt, max(1, B // 2))
    else:
        bt = max(1, min(int(batch_block), B))
    while B % bt:
        bt -= 1
    nb = B // bt

    # ---- weight residency + VMEM budget ----
    itemsize = jnp.dtype(mxu_dtype).itemsize
    w_bytes_total = L * ((3 * H * H + 2 * H * inner) * itemsize
                         + (9 * H + 3 * inner) * 4)
    weights_resident = w_bytes_total <= int(weights_resident_bytes)
    if vmem_limit_bytes is None:
        w_vmem = w_bytes_total if weights_resident else 2 * (w_bytes_total // max(L, 1))
        act_vmem = bt * Sq * (3 * H + inner) * 4 \
            + (0 if self_attn else bt * Sk * H * itemsize)
        io_vmem = 2 * 4 * (3 * bt * Sq * H
                           + (0 if self_attn else bt * Sk * H) + bt * Sk)
        est = w_vmem + act_vmem + io_vmem
        vmem_limit_bytes = int(min(max(2 * est, 32 << 20), 56 << 20))

    # ---- specs ----
    def wspec(shape):
        nd = len(shape)
        if weights_resident:
            return pl.BlockSpec((L,) + shape, lambda bi, l, _z=(0,) * (nd + 1): _z)
        return pl.BlockSpec((1,) + shape,
                            lambda bi, l, _nd=nd: (l,) + (0,) * _nd)

    q_spec = pl.BlockSpec((bt, Sq, H), lambda bi, l: (bi, 0, 0))
    kmask_spec = pl.BlockSpec((bt, 1, Sk), lambda bi, l: (bi, 0, 0))

    if self_attn:
        in_specs = [q_spec, kmask_spec, wspec((H, 3 * H)), wspec((1, 3 * H))]
        inputs = [query, kmask, fp["wqkv"], fp["bqkv"]]
    else:
        k_spec = pl.BlockSpec((bt, Sk, H), lambda bi, l: (bi, 0, 0))
        in_specs = [q_spec, k_spec, kmask_spec,
                    wspec((H, H)), wspec((1, H)),
                    wspec((H, 2 * H)), wspec((1, 2 * H))]
        inputs = [query, key, kmask, fp["wq"], fp["bq"], fp["wkv"], fp["bkv"]]

    in_specs += [wspec((H, H)), wspec((1, H)),          # wo, bo
                 wspec((1, H)), wspec((1, H)),          # attn LayerNorm gamma/beta
                 wspec((H, inner)), wspec((1, inner)),  # ffn dense_1
                 wspec((inner, H)), wspec((1, H)),      # ffn dense_2
                 wspec((1, H)), wspec((1, H))]          # ffn LayerNorm gamma/beta
    inputs += [fp["wo"], fp["bo"], fp["ln1_g"], fp["ln1_b"],
               fp["w1"], fp["b1"], fp["w2"], fp["b2"], fp["ln2_g"], fp["ln2_b"]]

    scratch = [pltpu.VMEM((bt * Sq, H), jnp.float32)]
    if not self_attn:
        scratch.append(pltpu.VMEM((bt * Sk, H), mxu_dtype))

    Lout = L if output_all_encoded_layers else 1
    if output_all_encoded_layers:
        out_spec = pl.BlockSpec((1, bt, Sq, H), lambda bi, l: (l, bi, 0, 0))
    else:
        # Constant layer index: output block stays VMEM-resident across layers,
        # one writeback per batch block.
        out_spec = pl.BlockSpec((1, bt, Sq, H), lambda bi, l: (0, bi, 0, 0))

    kernel = _build_kernel(n_heads=n_heads, layer_norm_eps=layer_norm_eps,
                           self_attn=self_attn, mxu_dtype=mxu_dtype,
                           hidden_act=hidden_act,
                           weights_resident=weights_resident,
                           exact_softmax=exact_softmax)

    out = pl.pallas_call(
        kernel,
        out_shape=jax.ShapeDtypeStruct((Lout, B, Sq, H), query.dtype),
        grid=(nb, L),
        in_specs=in_specs,
        out_specs=out_spec,
        scratch_shapes=scratch,
        compiler_params=pltpu.CompilerParams(
            dimension_semantics=("parallel", "arbitrary"),
            vmem_limit_bytes=int(vmem_limit_bytes)),
    )(*inputs)

    return [out[i] for i in range(Lout)]


# --------------------------- pure-JAX reference --------------------------------

def _ref_gelu(x):
    return x * 0.5 * (1.0 + jax.lax.erf(x / math.sqrt(2.0)))


def reference_forward(query, attention_mask, layer_params, key=None,
                      output_all_encoded_layers=True, *, n_heads, layer_norm_eps=1e-12):
    outs = []
    x = query
    for p in layer_params:
        xk = x if key is None else key
        B, Sq, H = x.shape
        Sk = xk.shape[1]
        hd = H // n_heads
        q = x @ p["wq"] + p["bq"]
        k = xk @ p["wk"] + p["bk"]
        v = xk @ p["wv"] + p["bv"]
        split = lambda t, S: t.reshape(B, S, n_heads, hd).transpose(0, 2, 1, 3)
        qh, kh, vh = split(q, Sq), split(k, Sk), split(v, Sk)
        scores = jnp.einsum("bhqd,bhkd->bhqk", qh, kh) / math.sqrt(hd) + attention_mask
        probs = jax.nn.softmax(scores, axis=-1)
        ctx = jnp.einsum("bhqk,bhkd->bhqd", probs, vh)
        ctx = ctx.transpose(0, 2, 1, 3).reshape(B, Sq, H)
        attn = _layernorm(ctx @ p["wo"] + p["bo"], p["ln1_g"], p["ln1_b"],
                          layer_norm_eps) + x
        h1 = _ref_gelu(attn @ p["w1"] + p["b1"])
        h2 = h1 @ p["w2"] + p["b2"]
        x = _layernorm(h2, p["ln2_g"], p["ln2_b"], layer_norm_eps) + attn
        if output_all_encoded_layers:
            outs.append(x)
    if not output_all_encoded_layers:
        outs.append(x)
    return outs


# ---------------------------- parameter creation ------------------------------

def init_params(rng, n_layers, hidden, inner):
    """PyTorch-equivalent per-layer params; weights stored pre-transposed as
    [in_features, out_features] so y = x @ W + b."""
    def w(k, shape, scale=0.02):
        return (scale * jax.random.normal(k, shape)).astype(jnp.float32)

    layers = []
    for l in range(n_layers):
        ks = jax.random.split(jax.random.fold_in(rng, l), 12)
        layers.append(dict(
            wq=w(ks[0], (hidden, hidden)), bq=w(ks[1], (1, hidden)),
            wk=w(ks[2], (hidden, hidden)), bk=w(ks[3], (1, hidden)),
            wv=w(ks[4], (hidden, hidden)), bv=w(ks[5], (1, hidden)),
            wo=w(ks[6], (hidden, hidden)), bo=w(ks[7], (1, hidden)),
            ln1_g=jnp.ones((1, hidden), jnp.float32),
            ln1_b=jnp.zeros((1, hidden), jnp.float32),
            w1=w(ks[8], (hidden, inner)), b1=w(ks[9], (1, inner)),
            w2=w(ks[10], (inner, hidden)), b2=w(ks[11], (1, hidden)),
            ln2_g=jnp.ones((1, hidden), jnp.float32),
            ln2_b=jnp.zeros((1, hidden), jnp.float32),
        ))
    return layers


# ----------------------------------- main --------------------------------------

if __name__ == "__main__":
    # Shapes consistent with the module defaults:
    # n_layers=2, n_heads=2, hidden_size=64, inner_size=256.
    B, S, H, INNER, N_HEADS, N_LAYERS = 2, 8, 64, 256, 2, 2
    LN_EPS = 1e-12

    root = jax.random.PRNGKey(0)
    k_x, k_key, k_params = jax.random.split(root, 3)

    query = jax.random.normal(k_x, (B, S, H), dtype=jnp.float32)
    params = init_params(k_params, N_LAYERS, H, INNER)

    # Additive key-padding mask: sequence lengths [8, 5]; padded keys get -10000.
    lengths = jnp.array([S, 5], dtype=jnp.int32)
    key_mask = jnp.where(jnp.arange(S)[None, :] < lengths[:, None], 0.0, -10000.0)
    attention_mask = key_mask[:, None, None, :].astype(jnp.float32)   # (B,1,1,S)

    # ---------------- self-attention (key=None), all layers ----------------
    ref = reference_forward(query, attention_mask, params, key=None,
                            output_all_encoded_layers=True,
                            n_heads=N_HEADS, layer_norm_eps=LN_EPS)
    ref = [jax.block_until_ready(o) for o in ref]

    outs_f32 = cross_attention_forward(
        query, attention_mask, params, key=None, output_all_encoded_layers=True,
        n_heads=N_HEADS, layer_norm_eps=LN_EPS, mxu_dtype=jnp.float32)
    outs_f32 = [jax.block_until_ready(o) for o in outs_f32]

    outs_bf16 = cross_attention_forward(
        query, attention_mask, params, key=None, output_all_encoded_layers=True,
        n_heads=N_HEADS, layer_norm_eps=LN_EPS, mxu_dtype=jnp.bfloat16)
    outs_bf16 = [jax.block_until_ready(o) for o in outs_bf16]

    assert len(outs_f32) == N_LAYERS and len(outs_bf16) == N_LAYERS
    for o in outs_f32 + outs_bf16:
        assert o.shape == (B, S, H)
        assert bool(jnp.all(jnp.isfinite(o)))
    for o, r in zip(outs_f32, ref):
        assert float(jnp.max(jnp.abs(o - r))) < 3e-2
    for o, r in zip(outs_bf16, ref):
        assert float(jnp.max(jnp.abs(o - r))) < 2e-1

    # -------- cross-attention (key != None), last layer only, per-layer
    # weight pipelining path (weights_resident_bytes=0 forces non-resident) ----
    SK = 16
    key_in = jax.random.normal(k_key, (B, SK, H), dtype=jnp.float32)
    klen = jnp.array([SK, 11], dtype=jnp.int32)
    kmask2 = jnp.where(jnp.arange(SK)[None, :] < klen[:, None], 0.0, -10000.0)
    kmask2 = kmask2[:, None, None, :].astype(jnp.float32)             # (B,1,1,SK)

    ref_x = reference_forward(query, kmask2, params, key=key_in,
                              output_all_encoded_layers=False,
                              n_heads=N_HEADS, layer_norm_eps=LN_EPS)
    ref_x = [jax.block_until_ready(o) for o in ref_x]

    outs_x = cross_attention_forward(
        query, kmask2, params, key=key_in, output_all_encoded_layers=False,
        n_heads=N_HEADS, layer_norm_eps=LN_EPS, mxu_dtype=jnp.float32,
        weights_resident_bytes=0)
    outs_x = [jax.block_until_ready(o) for o in outs_x]

    assert len(outs_x) == 1 and outs_x[0].shape == (B, S, H)
    assert bool(jnp.all(jnp.isfinite(outs_x[0])))
    assert float(jnp.max(jnp.abs(outs_x[0] - ref_x[0]))) < 3e-2

    print("KERNEL_OK")
</pallas_src>

<mosaic_0001>
module attributes {stable_mosaic.version = 11 : i64} {
  func.func @kernel(%arg0: i32, %arg1: i32, %arg2: memref<1x8x64xf32, #tpu.memory_space<vmem>>, %arg3: memref<1x1x8xf32, #tpu.memory_space<vmem>>, %arg4: memref<2x64x192xf32, #tpu.memory_space<vmem>>, %arg5: memref<2x1x192xf32, #tpu.memory_space<vmem>>, %arg6: memref<2x64x64xf32, #tpu.memory_space<vmem>>, %arg7: memref<2x1x64xf32, #tpu.memory_space<vmem>>, %arg8: memref<2x1x64xf32, #tpu.memory_space<vmem>>, %arg9: memref<2x1x64xf32, #tpu.memory_space<vmem>>, %arg10: memref<2x64x256xf32, #tpu.memory_space<vmem>>, %arg11: memref<2x1x256xf32, #tpu.memory_space<vmem>>, %arg12: memref<2x256x64xf32, #tpu.memory_space<vmem>>, %arg13: memref<2x1x64xf32, #tpu.memory_space<vmem>>, %arg14: memref<2x1x64xf32, #tpu.memory_space<vmem>>, %arg15: memref<2x1x64xf32, #tpu.memory_space<vmem>>, %arg16: memref<1x1x8x64xf32, #tpu.memory_space<vmem>>, %arg17: memref<8x64xf32, #tpu.memory_space<vmem>>) attributes {dimension_semantics = [#tpu.dimension_semantics<parallel>, #tpu.dimension_semantics<arbitrary>], iteration_bounds = array<i64: 2, 2>, scalar_prefetch = 0 : i64, scratch_operands = 1 : i64, tpu.core_type = #tpu.core_type<tc>, window_params = [{transform_indices = @transform_0, window_bounds = array<i64: 1, 8, 64>}, {transform_indices = @transform_1, window_bounds = array<i64: 1, 1, 8>}, {pipeline_mode = #tpu.pipeline_mode<synchronous>, transform_indices = @transform_2, window_bounds = array<i64: 2, 64, 192>}, {pipeline_mode = #tpu.pipeline_mode<synchronous>, transform_indices = @transform_3, window_bounds = array<i64: 2, 1, 192>}, {pipeline_mode = #tpu.pipeline_mode<synchronous>, transform_indices = @transform_4, window_bounds = array<i64: 2, 64, 64>}, {pipeline_mode = #tpu.pipeline_mode<synchronous>, transform_indices = @transform_5, window_bounds = array<i64: 2, 1, 64>}, {pipeline_mode = #tpu.pipeline_mode<synchronous>, transform_indices = @transform_6, window_bounds = array<i64: 2, 1, 64>}, {pipeline_mode = #tpu.pipeline_mode<synchronous>, transform_indices = @transform_7, window_bounds = array<i64: 2, 1, 64>}, {pipeline_mode = #tpu.pipeline_mode<synchronous>, transform_indices = @transform_8, window_bounds = array<i64: 2, 64, 256>}, {pipeline_mode = #tpu.pipeline_mode<synchronous>, transform_indices = @transform_9, window_bounds = array<i64: 2, 1, 256>}, {pipeline_mode = #tpu.pipeline_mode<synchronous>, transform_indices = @transform_10, window_bounds = array<i64: 2, 256, 64>}, {pipeline_mode = #tpu.pipeline_mode<synchronous>, transform_indices = @transform_11, window_bounds = array<i64: 2, 1, 64>}, {pipeline_mode = #tpu.pipeline_mode<synchronous>, transform_indices = @transform_12, window_bounds = array<i64: 2, 1, 64>}, {pipeline_mode = #tpu.pipeline_mode<synchronous>, transform_indices = @transform_13, window_bounds = array<i64: 2, 1, 64>}, {transform_indices = @transform_14, window_bounds = array<i64: 1, 1, 8, 64>}]} {
    %c0_i32 = arith.constant 0 : i32
    %0 = arith.cmpi eq, %arg1, %c0_i32 : i32
    %1 = arith.extui %0 : i1 to i32
    %c0_i32_0 = arith.constant 0 : i32
    %2 = arith.cmpi ne, %1, %c0_i32_0 : i32
    scf.if %2 {
      %c0_71 = arith.constant 0 : index
      %c0_72 = arith.constant 0 : index
      %c0_73 = arith.constant 0 : index
      %180 = vector.load %arg2[%c0_71, %c0_72, %c0_73] : memref<1x8x64xf32, #tpu.memory_space<vmem>>, vector<1x8x64xf32>
      %181 = vector.shape_cast %180 : vector<1x8x64xf32> to vector<8x64xf32>
      %c0_74 = arith.constant 0 : index
      %c0_75 = arith.constant 0 : index
      %182 = vector.load %arg17[%c0_74, %c0_75] : memref<8x64xf32, #tpu.memory_space<vmem>>, vector<8x64xf32>
      tpu.vector_store %arg17[%c0_74, %c0_75], %181 {strides = array<i32>} : memref<8x64xf32, #tpu.memory_space<vmem>>, vector<8x64xf32>,
    } else {
    }
    %c0 = arith.constant 0 : index
    %c0_1 = arith.constant 0 : index
    %3 = vector.load %arg17[%c0, %c0_1] : memref<8x64xf32, #tpu.memory_space<vmem>>, vector<8x64xf32>
    %4 = arith.index_cast %arg1 : i32 to index
    %c0_2 = arith.constant 0 : index
    %c0_3 = arith.constant 0 : index
    %5 = vector.load %arg4[%4, %c0_2, %c0_3] : memref<2x64x192xf32, #tpu.memory_space<vmem>>, vector<1x64x192xf32>
    %6 = vector.shape_cast %5 : vector<1x64x192xf32> to vector<64x192xf32>
    %cst = arith.constant dense<0.000000e+00> : vector<8x192xf32>
    %7 = tpu.matmul %3, %6, %cst {dimension_numbers = #tpu.dot_dimension_numbers<[1], [0], [0], [1], [0, 0, 1, 1], [], []>} : vector<8x64xf32>, vector<64x192xf32>, vector<8x192xf32> -> vector<8x192xf32>
    %8 = arith.index_cast %arg1 : i32 to index
    %c0_4 = arith.constant 0 : index
    %c0_5 = arith.constant 0 : index
    %9 = vector.load %arg5[%8, %c0_4, %c0_5] : memref<2x1x192xf32, #tpu.memory_space<vmem>>, vector<1x1x192xf32>
    %10 = vector.shape_cast %9 : vector<1x1x192xf32> to vector<1x192xf32>
    %11 = vector.broadcast %10 : vector<1x192xf32> to vector<8x192xf32>
    %12 = arith.addf %7, %11 : vector<8x192xf32>
    %13 = vector.extract_strided_slice %12 {offsets = [0, 0], sizes = [8, 64], strides = [1, 1]} : vector<8x192xf32> to vector<8x64xf32>
    %14 = vector.extract_strided_slice %12 {offsets = [0, 64], sizes = [8, 64], strides = [1, 1]} : vector<8x192xf32> to vector<8x64xf32>
    %15 = vector.extract_strided_slice %12 {offsets = [0, 128], sizes = [8, 64], strides = [1, 1]} : vector<8x192xf32> to vector<8x64xf32>
    %16 = vector.shape_cast %13 : vector<8x64xf32> to vector<1x8x64xf32>
    %17 = vector.shape_cast %14 : vector<8x64xf32> to vector<1x8x64xf32>
    %18 = vector.shape_cast %15 : vector<8x64xf32> to vector<1x8x64xf32>
    %c0_6 = arith.constant 0 : index
    %c0_7 = arith.constant 0 : index
    %c0_8 = arith.constant 0 : index
    %19 = vector.load %arg3[%c0_6, %c0_7, %c0_8] : memref<1x1x8xf32, #tpu.memory_space<vmem>>, vector<1x1x8xf32>
    %20 = vector.extract_strided_slice %16 {offsets = [0, 0, 0], sizes = [1, 8, 32], strides = [1, 1, 1]} : vector<1x8x64xf32> to vector<1x8x32xf32>
    %21 = vector.extract_strided_slice %17 {offsets = [0, 0, 0], sizes = [1, 8, 32], strides = [1, 1, 1]} : vector<1x8x64xf32> to vector<1x8x32xf32>
    %22 = vector.extract_strided_slice %18 {offsets = [0, 0, 0], sizes = [1, 8, 32], strides = [1, 1, 1]} : vector<1x8x64xf32> to vector<1x8x32xf32>
    %cst_9 = arith.constant dense<0.000000e+00> : vector<1x8x8xf32>
    %23 = tpu.matmul %20, %21, %cst_9 {dimension_numbers = #tpu.dot_dimension_numbers<[2], [2], [1], [1], [0, 0, 0, 1, 1, 1], [0], [0]>} : vector<1x8x32xf32>, vector<1x8x32xf32>, vector<1x8x8xf32> -> vector<1x8x8xf32>
    %24 = vector.broadcast %19 : vector<1x1x8xf32> to vector<1x8x8xf32>
    %25 = arith.addf %23, %24 : vector<1x8x8xf32>
    %cst_10 = arith.constant dense<0xFF800000> : vector<1x8xf32>
    %26 = vector.multi_reduction <maximumf>, %25, %cst_10 [2] : vector<1x8x8xf32> to vector<1x8xf32>
    %27 = vector.shape_cast %26 : vector<1x8xf32> to vector<1x8x1xf32>
    %28 = vector.broadcast %27 : vector<1x8x1xf32> to vector<1x8x8xf32>
    %29 = arith.subf %25, %28 : vector<1x8x8xf32>
    %30 = math.exp %29 : vector<1x8x8xf32>
    %cst_11 = arith.constant dense<0.000000e+00> : vector<1x8xf32>
    %31 = vector.multi_reduction <add>, %30, %cst_11 [2] : vector<1x8x8xf32> to vector<1x8xf32>
    %32 = vector.shape_cast %31 : vector<1x8xf32> to vector<1x8x1xf32>
    %33 = vector.broadcast %32 : vector<1x8x1xf32> to vector<1x8x8xf32>
    %34 = arith.divf %30, %33 : vector<1x8x8xf32>
    %cst_12 = arith.constant dense<0.000000e+00> : vector<1x8x32xf32>
    %35 = tpu.matmul %34, %22, %cst_12 {dimension_numbers = #tpu.dot_dimension_numbers<[2], [1], [1], [2], [0, 0, 0, 1, 1, 2], [0], [0]>} : vector<1x8x8xf32>, vector<1x8x32xf32>, vector<1x8x32xf32> -> vector<1x8x32xf32>
    %36 = vector.extract_strided_slice %16 {offsets = [0, 0, 32], sizes = [1, 8, 32], strides = [1, 1, 1]} : vector<1x8x64xf32> to vector<1x8x32xf32>
    %37 = vector.extract_strided_slice %17 {offsets = [0, 0, 32], sizes = [1, 8, 32], strides = [1, 1, 1]} : vector<1x8x64xf32> to vector<1x8x32xf32>
    %38 = vector.extract_strided_slice %18 {offsets = [0, 0, 32], sizes = [1, 8, 32], strides = [1, 1, 1]} : vector<1x8x64xf32> to vector<1x8x32xf32>
    %cst_13 = arith.constant dense<0.000000e+00> : vector<1x8x8xf32>
    %39 = tpu.matmul %36, %37, %cst_13 {dimension_numbers = #tpu.dot_dimension_numbers<[2], [2], [1], [1], [0, 0, 0, 1, 1, 1], [0], [0]>} : vector<1x8x32xf32>, vector<1x8x32xf32>, vector<1x8x8xf32> -> vector<1x8x8xf32>
    %40 = vector.broadcast %19 : vector<1x1x8xf32> to vector<1x8x8xf32>
    %41 = arith.addf %39, %40 : vector<1x8x8xf32>
    %cst_14 = arith.constant dense<0xFF800000> : vector<1x8xf32>
    %42 = vector.multi_reduction <maximumf>, %41, %cst_14 [2] : vector<1x8x8xf32> to vector<1x8xf32>
    %43 = vector.shape_cast %42 : vector<1x8xf32> to vector<1x8x1xf32>
    %44 = vector.broadcast %43 : vector<1x8x1xf32> to vector<1x8x8xf32>
    %45 = arith.subf %41, %44 : vector<1x8x8xf32>
    %46 = math.exp %45 : vector<1x8x8xf32>
    %cst_15 = arith.constant dense<0.000000e+00> : vector<1x8xf32>
    %47 = vector.multi_reduction <add>, %46, %cst_15 [2] : vector<1x8x8xf32> to vector<1x8xf32>
    %48 = vector.shape_cast %47 : vector<1x8xf32> to vector<1x8x1xf32>
    %49 = vector.broadcast %48 : vector<1x8x1xf32> to vector<1x8x8xf32>
    %50 = arith.divf %46, %49 : vector<1x8x8xf32>
    %cst_16 = arith.constant dense<0.000000e+00> : vector<1x8x32xf32>
    %51 = tpu.matmul %50, %38, %cst_16 {dimension_numbers = #tpu.dot_dimension_numbers<[2], [1], [1], [2], [0, 0, 0, 1, 1, 2], [0], [0]>} : vector<1x8x8xf32>, vector<1x8x32xf32>, vector<1x8x32xf32> -> vector<1x8x32xf32>
    %52 = tpu.concatenate %35, %51 in 2 : vector<1x8x32xf32>, vector<1x8x32xf32> -> vector<1x8x64xf32>
    %53 = vector.shape_cast %52 : vector<1x8x64xf32> to vector<8x64xf32>
    %54 = arith.index_cast %arg1 : i32 to index
    %c0_17 = arith.constant 0 : index
    %c0_18 = arith.constant 0 : index
    %55 = vector.load %arg6[%54, %c0_17, %c0_18] : memref<2x64x64xf32, #tpu.memory_space<vmem>>, vector<1x64x64xf32>
    %56 = vector.shape_cast %55 : vector<1x64x64xf32> to vector<64x64xf32>
    %cst_19 = arith.constant dense<0.000000e+00> : vector<8x64xf32>
    %57 = tpu.matmul %53, %56, %cst_19 {dimension_numbers = #tpu.dot_dimension_numbers<[1], [0], [0], [1], [0, 0, 1, 1], [], []>} : vector<8x64xf32>, vector<64x64xf32>, vector<8x64xf32> -> vector<8x64xf32>
    %58 = arith.index_cast %arg1 : i32 to index
    %c0_20 = arith.constant 0 : index
    %c0_21 = arith.constant 0 : index
    %59 = vector.load %arg7[%58, %c0_20, %c0_21] : memref<2x1x64xf32, #tpu.memory_space<vmem>>, vector<1x1x64xf32>
    %60 = vector.shape_cast %59 : vector<1x1x64xf32> to vector<1x64xf32>
    %61 = vector.broadcast %60 : vector<1x64xf32> to vector<8x64xf32>
    %62 = arith.addf %57, %61 : vector<8x64xf32>
    %63 = arith.index_cast %arg1 : i32 to index
    %c0_22 = arith.constant 0 : index
    %c0_23 = arith.constant 0 : index
    %64 = vector.load %arg8[%63, %c0_22, %c0_23] : memref<2x1x64xf32, #tpu.memory_space<vmem>>, vector<1x1x64xf32>
    %65 = vector.shape_cast %64 : vector<1x1x64xf32> to vector<1x64xf32>
    %66 = arith.index_cast %arg1 : i32 to index
    %c0_24 = arith.constant 0 : index
    %c0_25 = arith.constant 0 : index
    %67 = vector.load %arg9[%66, %c0_24, %c0_25] : memref<2x1x64xf32, #tpu.memory_space<vmem>>, vector<1x1x64xf32>
    %68 = vector.shape_cast %67 : vector<1x1x64xf32> to vector<1x64xf32>
    %cst_26 = arith.constant dense<0.000000e+00> : vector<8xf32>
    %69 = vector.multi_reduction <add>, %62, %cst_26 [1] : vector<8x64xf32> to vector<8xf32>
    %70 = vector.shape_cast %69 : vector<8xf32> to vector<8x1xf32>
    %cst_27 = arith.constant 6.400000e+01 : f32
    %71 = vector.broadcast %cst_27 : f32 to vector<8x1xf32>
    %72 = arith.divf %70, %71 : vector<8x1xf32>
    %73 = vector.broadcast %72 : vector<8x1xf32> to vector<8x64xf32>
    %74 = arith.subf %62, %73 : vector<8x64xf32>
    %75 = arith.mulf %74, %74 : vector<8x64xf32>
    %cst_28 = arith.constant dense<0.000000e+00> : vector<8xf32>
    %76 = vector.multi_reduction <add>, %75, %cst_28 [1] : vector<8x64xf32> to vector<8xf32>
    %77 = vector.shape_cast %76 : vector<8xf32> to vector<8x1xf32>
    %cst_29 = arith.constant 6.400000e+01 : f32
    %78 = vector.broadcast %cst_29 : f32 to vector<8x1xf32>
    %79 = arith.divf %77, %78 : vector<8x1xf32>
    %cst_30 = arith.constant 9.99999996E-13 : f32
    %80 = vector.broadcast %cst_30 : f32 to vector<8x1xf32>
    %81 = arith.addf %79, %80 : vector<8x1xf32>
    %82 = math.rsqrt %81 : vector<8x1xf32>
    %83 = vector.broadcast %82 : vector<8x1xf32> to vector<8x64xf32>
    %84 = arith.mulf %74, %83 : vector<8x64xf32>
    %85 = vector.broadcast %65 : vector<1x64xf32> to vector<8x64xf32>
    %86 = arith.mulf %84, %85 : vector<8x64xf32>
    %87 = vector.broadcast %68 : vector<1x64xf32> to vector<8x64xf32>
    %88 = arith.addf %86, %87 : vector<8x64xf32>
    %89 = arith.addf %88, %3 : vector<8x64xf32>
    %90 = arith.index_cast %arg1 : i32 to index
    %c0_31 = arith.constant 0 : index
    %c0_32 = arith.constant 0 : index
    %91 = vector.load %arg10[%90, %c0_31, %c0_32] : memref<2x64x256xf32, #tpu.memory_space<vmem>>, vector<1x64x256xf32>
    %92 = vector.shape_cast %91 : vector<1x64x256xf32> to vector<64x256xf32>
    %cst_33 = arith.constant dense<0.000000e+00> : vector<8x256xf32>
    %93 = tpu.matmul %89, %92, %cst_33 {dimension_numbers = #tpu.dot_dimension_numbers<[1], [0], [0], [1], [0, 0, 1, 1], [], []>} : vector<8x64xf32>, vector<64x256xf32>, vector<8x256xf32> -> vector<8x256xf32>
    %94 = arith.index_cast %arg1 : i32 to index
    %c0_34 = arith.constant 0 : index
    %c0_35 = arith.constant 0 : index
    %95 = vector.load %arg11[%94, %c0_34, %c0_35] : memref<2x1x256xf32, #tpu.memory_space<vmem>>, vector<1x1x256xf32>
    %96 = vector.shape_cast %95 : vector<1x1x256xf32> to vector<1x256xf32>
    %97 = vector.broadcast %96 : vector<1x256xf32> to vector<8x256xf32>
    %98 = arith.addf %93, %97 : vector<8x256xf32>
    %cst_36 = arith.constant 5.000000e-01 : f32
    %99 = vector.broadcast %cst_36 : f32 to vector<8x256xf32>
    %100 = arith.mulf %98, %99 : vector<8x256xf32>
    %cst_37 = arith.constant 0.707106769 : f32
    %101 = vector.broadcast %cst_37 : f32 to vector<8x256xf32>
    %102 = arith.mulf %98, %101 : vector<8x256xf32>
    %103 = math.absf %102 : vector<8x256xf32>
    %cst_38 = arith.constant 0.327591091 : f32
    %104 = vector.broadcast %cst_38 : f32 to vector<8x256xf32>
    %105 = arith.mulf %104, %103 : vector<8x256xf32>
    %cst_39 = arith.constant 1.000000e+00 : f32
    %106 = vector.broadcast %cst_39 : f32 to vector<8x256xf32>
    %107 = arith.addf %106, %105 : vector<8x256xf32>
    %cst_40 = arith.constant 1.000000e+00 : f32
    %108 = vector.broadcast %cst_40 : f32 to vector<8x256xf32>
    %109 = arith.divf %108, %107 : vector<8x256xf32>
    %cst_41 = arith.constant 1.06140542 : f32
    %110 = vector.broadcast %cst_41 : f32 to vector<8x256xf32>
    %111 = arith.mulf %110, %109 : vector<8x256xf32>
    %cst_42 = arith.constant -1.45315206 : f32
    %112 = vector.broadcast %cst_42 : f32 to vector<8x256xf32>
    %113 = arith.addf %111, %112 : vector<8x256xf32>
    %114 = arith.mulf %113, %109 : vector<8x256xf32>
    %cst_43 = arith.constant 1.42141378 : f32
    %115 = vector.broadcast %cst_43 : f32 to vector<8x256xf32>
    %116 = arith.addf %114, %115 : vector<8x256xf32>
    %117 = arith.mulf %116, %109 : vector<8x256xf32>
    %cst_44 = arith.constant -0.284496725 : f32
    %118 = vector.broadcast %cst_44 : f32 to vector<8x256xf32>
    %119 = arith.addf %117, %118 : vector<8x256xf32>
    %120 = arith.mulf %119, %109 : vector<8x256xf32>
    %cst_45 = arith.constant 0.254829586 : f32
    %121 = vector.broadcast %cst_45 : f32 to vector<8x256xf32>
    %122 = arith.addf %120, %121 : vector<8x256xf32>
    %123 = arith.mulf %122, %109 : vector<8x256xf32>
    %cst_46 = arith.constant 0.000000e+00 : f32
    %124 = vector.broadcast %cst_46 : f32 to vector<8x256xf32>
    %125 = arith.subf %124, %103 : vector<8x256xf32>
    %126 = arith.mulf %125, %103 : vector<8x256xf32>
    %127 = math.exp %126 : vector<8x256xf32>
    %128 = arith.mulf %123, %127 : vector<8x256xf32>
    %cst_47 = arith.constant 1.000000e+00 : f32
    %129 = vector.broadcast %cst_47 : f32 to vector<8x256xf32>
    %130 = arith.subf %129, %128 : vector<8x256xf32>
    %cst_48 = arith.constant 0.000000e+00 : f32
    %131 = vector.broadcast %cst_48 : f32 to vector<8x256xf32>
    %132 = arith.cmpf oge, %102, %131 : vector<8x256xf32>
    %cst_49 = arith.constant 0.000000e+00 : f32
    %133 = vector.broadcast %cst_49 : f32 to vector<8x256xf32>
    %134 = arith.subf %133, %130 : vector<8x256xf32>
    %135 = arith.select %132, %130, %134 : vector<8x256xi1>, vector<8x256xf32>
    %cst_50 = arith.constant 1.000000e+00 : f32
    %136 = vector.broadcast %cst_50 : f32 to vector<8x256xf32>
    %137 = arith.addf %136, %135 : vector<8x256xf32>
    %138 = arith.mulf %100, %137 : vector<8x256xf32>
    %139 = arith.index_cast %arg1 : i32 to index
    %c0_51 = arith.constant 0 : index
    %c0_52 = arith.constant 0 : index
    %140 = vector.load %arg12[%139, %c0_51, %c0_52] : memref<2x256x64xf32, #tpu.memory_space<vmem>>, vector<1x256x64xf32>
    %141 = vector.shape_cast %140 : vector<1x256x64xf32> to vector<256x64xf32>
    %cst_53 = arith.constant dense<0.000000e+00> : vector<8x64xf32>
    %142 = tpu.matmul %138, %141, %cst_53 {dimension_numbers = #tpu.dot_dimension_numbers<[1], [0], [0], [1], [0, 0, 1, 1], [], []>} : vector<8x256xf32>, vector<256x64xf32>, vector<8x64xf32> -> vector<8x64xf32>
    %143 = arith.index_cast %arg1 : i32 to index
    %c0_54 = arith.constant 0 : index
    %c0_55 = arith.constant 0 : index
    %144 = vector.load %arg13[%143, %c0_54, %c0_55] : memref<2x1x64xf32, #tpu.memory_space<vmem>>, vector<1x1x64xf32>
    %145 = vector.shape_cast %144 : vector<1x1x64xf32> to vector<1x64xf32>
    %146 = vector.broadcast %145 : vector<1x64xf32> to vector<8x64xf32>
    %147 = arith.addf %142, %146 : vector<8x64xf32>
    %148 = arith.index_cast %arg1 : i32 to index
    %c0_56 = arith.constant 0 : index
    %c0_57 = arith.constant 0 : index
    %149 = vector.load %arg14[%148, %c0_56, %c0_57] : memref<2x1x64xf32, #tpu.memory_space<vmem>>, vector<1x1x64xf32>
    %150 = vector.shape_cast %149 : vector<1x1x64xf32> to vector<1x64xf32>
    %151 = arith.index_cast %arg1 : i32 to index
    %c0_58 = arith.constant 0 : index
    %c0_59 = arith.constant 0 : index
    %152 = vector.load %arg15[%151, %c0_58, %c0_59] : memref<2x1x64xf32, #tpu.memory_space<vmem>>, vector<1x1x64xf32>
    %153 = vector.shape_cast %152 : vector<1x1x64xf32> to vector<1x64xf32>
    %cst_60 = arith.constant dense<0.000000e+00> : vector<8xf32>
    %154 = vector.multi_reduction <add>, %147, %cst_60 [1] : vector<8x64xf32> to vector<8xf32>
    %155 = vector.shape_cast %154 : vector<8xf32> to vector<8x1xf32>
    %cst_61 = arith.constant 6.400000e+01 : f32
    %156 = vector.broadcast %cst_61 : f32 to vector<8x1xf32>
    %157 = arith.divf %155, %156 : vector<8x1xf32>
    %158 = vector.broadcast %157 : vector<8x1xf32> to vector<8x64xf32>
    %159 = arith.subf %147, %158 : vector<8x64xf32>
    %160 = arith.mulf %159, %159 : vector<8x64xf32>
    %cst_62 = arith.constant dense<0.000000e+00> : vector<8xf32>
    %161 = vector.multi_reduction <add>, %160, %cst_62 [1] : vector<8x64xf32> to vector<8xf32>
    %162 = vector.shape_cast %161 : vector<8xf32> to vector<8x1xf32>
    %cst_63 = arith.constant 6.400000e+01 : f32
    %163 = vector.broadcast %cst_63 : f32 to vector<8x1xf32>
    %164 = arith.divf %162, %163 : vector<8x1xf32>
    %cst_64 = arith.constant 9.99999996E-13 : f32
    %165 = vector.broadcast %cst_64 : f32 to vector<8x1xf32>
    %166 = arith.addf %164, %165 : vector<8x1xf32>
    %167 = math.rsqrt %166 : vector<8x1xf32>
    %168 = vector.broadcast %167 : vector<8x1xf32> to vector<8x64xf32>
    %169 = arith.mulf %159, %168 : vector<8x64xf32>
    %170 = vector.broadcast %150 : vector<1x64xf32> to vector<8x64xf32>
    %171 = arith.mulf %169, %170 : vector<8x64xf32>
    %172 = vector.broadcast %153 : vector<1x64xf32> to vector<8x64xf32>
    %173 = arith.addf %171, %172 : vector<8x64xf32>
    %174 = arith.addf %173, %89 : vector<8x64xf32>
    %c0_65 = arith.constant 0 : index
    %c0_66 = arith.constant 0 : index
    %175 = vector.load %arg17[%c0_65, %c0_66] : memref<8x64xf32, #tpu.memory_space<vmem>>, vector<8x64xf32>
    tpu.vector_store %arg17[%c0_65, %c0_66], %174 {strides = array<i32>} : memref<8x64xf32, #tpu.memory_space<vmem>>, vector<8x64xf32>,
    %176 = vector.shape_cast %174 : vector<8x64xf32> to vector<1x8x64xf32>
    %c0_67 = arith.constant 0 : index
    %c0_68 = arith.constant 0 : index
    %c0_69 = arith.constant 0 : index
    %c0_70 = arith.constant 0 : index
    %177 = vector.load %arg16[%c0_67, %c0_68, %c0_69, %c0_70] : memref<1x1x8x64xf32, #tpu.memory_space<vmem>>, vector<1x1x8x64xf32>
    %178 = vector.shape_cast %177 : vector<1x1x8x64xf32> to vector<1x8x64xf32>
    %179 = vector.shape_cast %176 : vector<1x8x64xf32> to vector<1x1x8x64xf32>
    tpu.vector_store %arg16[%c0_67, %c0_68, %c0_69, %c0_70], %179 {strides = array<i32>} : memref<1x1x8x64xf32, #tpu.memory_space<vmem>>, vector<1x1x8x64xf32>,
    return
  }
  func.func @transform_0(%arg0: i32, %arg1: i32) -> (i32, i32, i32) {
    %c0_i32 = arith.constant 0 : i32
    %c0_i32_0 = arith.constant 0 : i32
    %c0_i32_1 = arith.constant 0 : i32
    return %arg0, %c0_i32, %c0_i32_0 : i32, i32, i32
  }
  func.func @transform_1(%arg0: i32, %arg1: i32) -> (i32, i32, i32) {
    %c0_i32 = arith.constant 0 : i32
    %c0_i32_0 = arith.constant 0 : i32
    %c0_i32_1 = arith.constant 0 : i32
    return %arg0, %c0_i32, %c0_i32_0 : i32, i32, i32
  }
  func.func @transform_2(%arg0: i32, %arg1: i32) -> (i32, i32, i32) {
    %c0_i32 = arith.constant 0 : i32
    %c0_i32_0 = arith.constant 0 : i32
    %c0_i32_1 = arith.constant 0 : i32
    %c0_i32_2 = arith.constant 0 : i32
    return %c0_i32, %c0_i32_0, %c0_i32_1 : i32, i32, i32
  }
  func.func @transform_3(%arg0: i32, %arg1: i32) -> (i32, i32, i32) {
    %c0_i32 = arith.constant 0 : i32
    %c0_i32_0 = arith.constant 0 : i32
    %c0_i32_1 = arith.constant 0 : i32
    %c0_i32_2 = arith.constant 0 : i32
    return %c0_i32, %c0_i32_0, %c0_i32_1 : i32, i32, i32
  }
  func.func @transform_4(%arg0: i32, %arg1: i32) -> (i32, i32, i32) {
    %c0_i32 = arith.constant 0 : i32
    %c0_i32_0 = arith.constant 0 : i32
    %c0_i32_1 = arith.constant 0 : i32
    %c0_i32_2 = arith.constant 0 : i32
    return %c0_i32, %c0_i32_0, %c0_i32_1 : i32, i32, i32
  }
  func.func @transform_5(%arg0: i32, %arg1: i32) -> (i32, i32, i32) {
    %c0_i32 = arith.constant 0 : i32
    %c0_i32_0 = arith.constant 0 : i32
    %c0_i32_1 = arith.constant 0 : i32
    %c0_i32_2 = arith.constant 0 : i32
    return %c0_i32, %c0_i32_0, %c0_i32_1 : i32, i32, i32
  }
  func.func @transform_6(%arg0: i32, %arg1: i32) -> (i32, i32, i32) {
    %c0_i32 = arith.constant 0 : i32
    %c0_i32_0 = arith.constant 0 : i32
    %c0_i32_1 = arith.constant 0 : i32
    %c0_i32_2 = arith.constant 0 : i32
    return %c0_i32, %c0_i32_0, %c0_i32_1 : i32, i32, i32
  }
  func.func @transform_7(%arg0: i32, %arg1: i32) -> (i32, i32, i32) {
    %c0_i32 = arith.constant 0 : i32
    %c0_i32_0 = arith.constant 0 : i32
    %c0_i32_1 = arith.constant 0 : i32
    %c0_i32_2 = arith.constant 0 : i32
    return %c0_i32, %c0_i32_0, %c0_i32_1 : i32, i32, i32
  }
  func.func @transform_8(%arg0: i32, %arg1: i32) -> (i32, i32, i32) {
    %c0_i32 = arith.constant 0 : i32
    %c0_i32_0 = arith.constant 0 : i32
    %c0_i32_1 = arith.constant 0 : i32
    %c0_i32_2 = arith.constant 0 : i32
    return %c0_i32, %c0_i32_0, %c0_i32_1 : i32, i32, i32
  }
  func.func @transform_9(%arg0: i32, %arg1: i32) -> (i32, i32, i32) {
    %c0_i32 = arith.constant 0 : i32
    %c0_i32_0 = arith.constant 0 : i32
    %c0_i32_1 = arith.constant 0 : i32
    %c0_i32_2 = arith.constant 0 : i32
    return %c0_i32, %c0_i32_0, %c0_i32_1 : i32, i32, i32
  }
  func.func @transform_10(%arg0: i32, %arg1: i32) -> (i32, i32, i32) {
    %c0_i32 = arith.constant 0 : i32
    %c0_i32_0 = arith.constant 0 : i32
    %c0_i32_1 = arith.constant 0 : i32
    %c0_i32_2 = arith.constant 0 : i32
    return %c0_i32, %c0_i32_0, %c0_i32_1 : i32, i32, i32
  }
  func.func @transform_11(%arg0: i32, %arg1: i32) -> (i32, i32, i32) {
    %c0_i32 = arith.constant 0 : i32
    %c0_i32_0 = arith.constant 0 : i32
    %c0_i32_1 = arith.constant 0 : i32
    %c0_i32_2 = arith.constant 0 : i32
    return %c0_i32, %c0_i32_0, %c0_i32_1 : i32, i32, i32
  }
  func.func @transform_12(%arg0: i32, %arg1: i32) -> (i32, i32, i32) {
    %c0_i32 = arith.constant 0 : i32
    %c0_i32_0 = arith.constant 0 : i32
    %c0_i32_1 = arith.constant 0 : i32
    %c0_i32_2 = arith.constant 0 : i32
    return %c0_i32, %c0_i32_0, %c0_i32_1 : i32, i32, i32
  }
  func.func @transform_13(%arg0: i32, %arg1: i32) -> (i32, i32, i32) {
    %c0_i32 = arith.constant 0 : i32
    %c0_i32_0 = arith.constant 0 : i32
    %c0_i32_1 = arith.constant 0 : i32
    %c0_i32_2 = arith.constant 0 : i32
    return %c0_i32, %c0_i32_0, %c0_i32_1 : i32, i32, i32
  }
  func.func @transform_14(%arg0: i32, %arg1: i32) -> (i32, i32, i32, i32) {
    %c0_i32 = arith.constant 0 : i32
    %c0_i32_0 = arith.constant 0 : i32
    %c0_i32_1 = arith.constant 0 : i32
    return %arg1, %arg0, %c0_i32, %c0_i32_0 : i32, i32, i32, i32
  }
}

</mosaic_0001>

<llo_original>
// kernel: tpu_custom_call.1
$region0: #{tpu_custom_call.1}
  #allocation0 [shape = 'u32[]', space=smem, size = 0x4, offset = 0x4, fixed_abs, tag = 'smem constant byte address 0x4 - core index']
  #allocation1 [shape = 'u32[72,128]{1,0:T(1,128)}', space=vmem, size = 0x9000, scoped, tag = 'internal scratch']
  #allocation2 [shape = 'f32[8,64]{1,0:T(8,128)}', space=vmem, size = 0x1000, scoped, tag = 'scratch operand']
  %s0 = inlined_call_operand.vmem [shape: f32[2,8,64], index: 0, kind: input, shape index: {}]
  %s1 = inlined_call_operand.vmem [shape: f32[2,1,8], index: 1, kind: input, shape index: {}]
  %s2 = inlined_call_operand.vmem [shape: f32[2,64,192], index: 2, kind: input, shape index: {}]
  %s3 = inlined_call_operand.vmem [shape: f32[2,1,192], index: 3, kind: input, shape index: {}]
  %s4 = inlined_call_operand.vmem [shape: f32[2,64,64], index: 4, kind: input, shape index: {}]
  %s5 = inlined_call_operand.vmem [shape: f32[2,1,64], index: 5, kind: input, shape index: {}]
  %s6 = inlined_call_operand.vmem [shape: f32[2,1,64], index: 6, kind: input, shape index: {}]
  %s7 = inlined_call_operand.vmem [shape: f32[2,1,64], index: 7, kind: input, shape index: {}]
  %s8 = inlined_call_operand.vmem [shape: f32[2,64,256], index: 8, kind: input, shape index: {}]
  %s9 = inlined_call_operand.vmem [shape: f32[2,1,256], index: 9, kind: input, shape index: {}]
  %s10 = inlined_call_operand.vmem [shape: f32[2,256,64], index: 10, kind: input, shape index: {}]
  %s11 = inlined_call_operand.vmem [shape: f32[2,1,64], index: 11, kind: input, shape index: {}]
  %s12 = inlined_call_operand.vmem [shape: f32[2,1,64], index: 12, kind: input, shape index: {}]
  %s13 = inlined_call_operand.vmem [shape: f32[2,1,64], index: 13, kind: input, shape index: {}]
  %s14 = inlined_call_operand.hbm [shape: f32[2,2,8,64], index: 14, kind: output, shape index: {}]
  %s15 = sld [smem:[#allocation0]]
  $region93: #{tpu_custom_call.1} parent=0
    _
  %s17 = ssub.s32 1, %s15
  %s18 = scalar_select 0, %s17, %s15
  $region1: #{tpu_custom_call.1} parent=0
    #allocation3 [shape = 'u8[8192]{0}', space=vmem, size = 0x2000, scoped, tag = 'output window, operand 0']
    #allocation4 [shape = 's32[2]{0}', space=sflag, size = 0x8, scoped, tag = 'scoped memory for tpu_custom_call.1']
    %19 = vsyncpa [#allocation4], 0
    %s20 = scalar_lea.sflag [#allocation4], 1
    %21 = vsyncpa %s20, 0
    loop: start=0, step=1, limit=6
    $region2: #{tpu_custom_call.1} parent=1 // loop_pre_header
      _
    $region3: #{tpu_custom_call.1} parent=1 // loop_header
      %s23 = sphi 0, %s27
      %p24 = scmp.ge.s32.totalorder %s23, 6
      %s30 = sphi 0, %s42
      %s31 = sphi 0, %s38
      %s32 = sphi 0, %s30
      %s33 = sphi 0, %s31
      %s34 = sphi 0, %s32
      %s35 = sphi 0, %s33
      %s45 = sphi 0, %s47
      %s48 = sphi 0, %s45
      %s49 = sphi 0, %s48
      %s65 = sphi 0, %s49
      %s71 = sphi 0, %s73
      %s74 = sphi 0, %s71
      %s75 = sphi 0, %s74
      %s91 = sphi 0, %s75
      %s95 = sphi 0, %s95
      %s97 = sphi 0, %s95
      %s98 = sphi 0, %s97
      %s112 = sphi 0, %s98
      %s116 = sphi 0, %s116
      %s118 = sphi 0, %s116
      %s119 = sphi 0, %s118
      %s133 = sphi 0, %s119
      %s137 = sphi 0, %s137
      %s139 = sphi 0, %s137
      %s140 = sphi 0, %s139
      %s154 = sphi 0, %s140
      %s158 = sphi 0, %s158
      %s160 = sphi 0, %s158
      %s161 = sphi 0, %s160
      %s175 = sphi 0, %s161
      %s179 = sphi 0, %s179
      %s181 = sphi 0, %s179
      %s182 = sphi 0, %s181
      %s196 = sphi 0, %s182
      %s200 = sphi 0, %s200
      %s202 = sphi 0, %s200
      %s203 = sphi 0, %s202
      %s217 = sphi 0, %s203
      %s221 = sphi 0, %s221
      %s223 = sphi 0, %s221
      %s224 = sphi 0, %s223
      %s238 = sphi 0, %s224
      %s242 = sphi 0, %s242
      %s244 = sphi 0, %s242
      %s245 = sphi 0, %s244
      %s259 = sphi 0, %s245
      %s263 = sphi 0, %s263
      %s265 = sphi 0, %s263
      %s266 = sphi 0, %s265
      %s280 = sphi 0, %s266
      %s284 = sphi 0, %s284
      %s286 = sphi 0, %s284
      %s287 = sphi 0, %s286
      %s301 = sphi 0, %s287
      %s305 = sphi 0, %s305
      %s307 = sphi 0, %s305
      %s308 = sphi 0, %s307
      %s322 = sphi 0, %s308
      %s326 = sphi 0, %s326
      %s328 = sphi 0, %s326
      %s329 = sphi 0, %s328
      %s343 = sphi 0, %s329
      %s351 = sphi 0, %s353
      %s354 = sphi 0, %s351
      %s355 = sphi 0, %s354
      %s371 = sphi 0, %s355
    $region4: #{tpu_custom_call.1} parent=1 // loop_header_branch
      %26 = sbr.rel (%p24) target = $region8
    $region5: #{tpu_custom_call.1} parent=1 // loop_body
      %s28 = ssub.s32 %s23, 1
      %s29 = ssub.s32 %s23, 2
      %s36 = sadd.s32 1, %s31
      %p37 = scmp.ge.s32.totalorder %s36, 2
      %s38 = scalar_select %p37, 0, %s36
      %s39 = sadd.s32 1, %s30
      %s40 = scalar_select %p37, %s39, %s30
      %p41 = scmp.ge.s32.totalorder %s40, 2
      %s42 = scalar_select %p41, 0, %s40
      %s43 = ssub.s32 %s30, %s42
      %p44 = scmp.eq.s32.totalorder %s43, 0
      %s46 = sadd.s32 %s45, 1
      %s47 = scalar_select %p44, %s45, %s46
      %p50 = pneg %p44
      %p51 = scmp.eq.s32.totalorder %s23, 3
      %p52 = por %p50, %p51
      %p53 = scmp.ne.s32.totalorder %s45, %s48
      %p54 = scmp.eq.s32.totalorder %s23, 0
      %p55 = por %p53, %p54
      %p56 = scmp.ne.s32.totalorder %s45, %s48
      %p57 = scmp.eq.s32.totalorder %s28, 3
      %p58 = por %p56, %p57
      %p59 = scmp.ne.s32.totalorder %s48, %s49
      %p60 = scmp.eq.s32.totalorder %s28, 0
      %p61 = por %p59, %p60
      %p62 = scmp.ne.s32.totalorder %s48, %s49
      %p63 = scmp.eq.s32.totalorder %s29, 3
      %p64 = por %p62, %p63
      %p66 = scmp.ne.s32.totalorder %s49, %s65
      %p67 = scmp.eq.s32.totalorder %s29, 0
      %p68 = por %p66, %p67
      %s69 = ssub.s32 %s30, %s42
      %p70 = scmp.eq.s32.totalorder %s69, 0
      %s72 = sadd.s32 %s71, 1
      %s73 = scalar_select %p70, %s71, %s72
      %p76 = pneg %p70
      %p77 = scmp.eq.s32.totalorder %s23, 3
      %p78 = por %p76, %p77
      %p79 = scmp.ne.s32.totalorder %s71, %s74
      %p80 = scmp.eq.s32.totalorder %s23, 0
      %p81 = por %p79, %p80
      %p82 = scmp.ne.s32.totalorder %s71, %s74
      %p83 = scmp.eq.s32.totalorder %s28, 3
      %p84 = por %p82, %p83
      %p85 = scmp.ne.s32.totalorder %s74, %s75
      %p86 = scmp.eq.s32.totalorder %s28, 0
      %p87 = por %p85, %p86
      %p88 = scmp.ne.s32.totalorder %s74, %s75
      %p89 = scmp.eq.s32.totalorder %s29, 3
      %p90 = por %p88, %p89
      %p92 = scmp.ne.s32.totalorder %s75, %s91
      %p93 = scmp.eq.s32.totalorder %s29, 0
      %p94 = por %p92, %p93
      %s96 = sadd.s32 %s95, 1
      %p99 = scmp.eq.s32.totalorder %s23, 3
      %p100 = scmp.ne.s32.totalorder %s95, %s97
      %p101 = scmp.eq.s32.totalorder %s23, 0
      %p102 = por %p100, %p101
      %p103 = scmp.ne.s32.totalorder %s95, %s97
      %p104 = scmp.eq.s32.totalorder %s28, 3
      %p105 = por %p103, %p104
      %p106 = scmp.ne.s32.totalorder %s97, %s98
      %p107 = scmp.eq.s32.totalorder %s28, 0
      %p108 = por %p106, %p107
      %p109 = scmp.ne.s32.totalorder %s97, %s98
      %p110 = scmp.eq.s32.totalorder %s29, 3
      %p111 = por %p109, %p110
      %p113 = scmp.ne.s32.totalorder %s98, %s112
      %p114 = scmp.eq.s32.totalorder %s29, 0
      %p115 = por %p113, %p114
      %s117 = sadd.s32 %s116, 1
      %p120 = scmp.eq.s32.totalorder %s23, 3
      %p121 = scmp.ne.s32.totalorder %s116, %s118
      %p122 = scmp.eq.s32.totalorder %s23, 0
      %p123 = por %p121, %p122
      %p124 = scmp.ne.s32.totalorder %s116, %s118
      %p125 = scmp.eq.s32.totalorder %s28, 3
      %p126 = por %p124, %p125
      %p127 = scmp.ne.s32.totalorder %s118, %s119
      %p128 = scmp.eq.s32.totalorder %s28, 0
      %p129 = por %p127, %p128
      %p130 = scmp.ne.s32.totalorder %s118, %s119
      %p131 = scmp.eq.s32.totalorder %s29, 3
      %p132 = por %p130, %p131
      %p134 = scmp.ne.s32.totalorder %s119, %s133
      %p135 = scmp.eq.s32.totalorder %s29, 0
      %p136 = por %p134, %p135
      %s138 = sadd.s32 %s137, 1
      %p141 = scmp.eq.s32.totalorder %s23, 3
      %p142 = scmp.ne.s32.totalorder %s137, %s139
      %p143 = scmp.eq.s32.totalorder %s23, 0
      %p144 = por %p142, %p143
      %p145 = scmp.ne.s32.totalorder %s137, %s139
      %p146 = scmp.eq.s32.totalorder %s28, 3
      %p147 = por %p145, %p146
      %p148 = scmp.ne.s32.totalorder %s139, %s140
      %p149 = scmp.eq.s32.totalorder %s28, 0
      %p150 = por %p148, %p149
      %p151 = scmp.ne.s32.totalorder %s139, %s140
      %p152 = scmp.eq.s32.totalorder %s29, 3
      %p153 = por %p151, %p152
      %p155 = scmp.ne.s32.totalorder %s140, %s154
      %p156 = scmp.eq.s32.totalorder %s29, 0
      %p157 = por %p155, %p156
      %s159 = sadd.s32 %s158, 1
      %p162 = scmp.eq.s32.totalorder %s23, 3
      %p163 = scmp.ne.s32.totalorder %s158, %s160
      %p164 = scmp.eq.s32.totalorder %s23, 0
      %p165 = por %p163, %p164
      %p166 = scmp.ne.s32.totalorder %s158, %s160
      %p167 = scmp.eq.s32.totalorder %s28, 3
      %p168 = por %p166, %p167
      %p169 = scmp.ne.s32.totalorder %s160, %s161
      %p170 = scmp.eq.s32.totalorder %s28, 0
      %p171 = por %p169, %p170
      %p172 = scmp.ne.s32.totalorder %s160, %s161
      %p173 = scmp.eq.s32.totalorder %s29, 3
      %p174 = por %p172, %p173
      %p176 = scmp.ne.s32.totalorder %s161, %s175
      %p177 = scmp.eq.s32.totalorder %s29, 0
      %p178 = por %p176, %p177
      %s180 = sadd.s32 %s179, 1
      %p183 = scmp.eq.s32.totalorder %s23, 3
      %p184 = scmp.ne.s32.totalorder %s179, %s181
      %p185 = scmp.eq.s32.totalorder %s23, 0
      %p186 = por %p184, %p185
      %p187 = scmp.ne.s32.totalorder %s179, %s181
      %p188 = scmp.eq.s32.totalorder %s28, 3
      %p189 = por %p187, %p188
      %p190 = scmp.ne.s32.totalorder %s181, %s182
      %p191 = scmp.eq.s32.totalorder %s28, 0
      %p192 = por %p190, %p191
      %p193 = scmp.ne.s32.totalorder %s181, %s182
      %p194 = scmp.eq.s32.totalorder %s29, 3
      %p195 = por %p193, %p194
      %p197 = scmp.ne.s32.totalorder %s182, %s196
      %p198 = scmp.eq.s32.totalorder %s29, 0
      %p199 = por %p197, %p198
      %s201 = sadd.s32 %s200, 1
      %p204 = scmp.eq.s32.totalorder %s23, 3
      %p205 = scmp.ne.s32.totalorder %s200, %s202
      %p206 = scmp.eq.s32.totalorder %s23, 0
      %p207 = por %p205, %p206
      %p208 = scmp.ne.s32.totalorder %s200, %s202
      %p209 = scmp.eq.s32.totalorder %s28, 3
      %p210 = por %p208, %p209
      %p211 = scmp.ne.s32.totalorder %s202, %s203
      %p212 = scmp.eq.s32.totalorder %s28, 0
      %p213 = por %p211, %p212
      %p214 = scmp.ne.s32.totalorder %s202, %s203
      %p215 = scmp.eq.s32.totalorder %s29, 3
      %p216 = por %p214, %p215
      %p218 = scmp.ne.s32.totalorder %s203, %s217
      %p219 = scmp.eq.s32.totalorder %s29, 0
      %p220 = por %p218, %p219
      %s222 = sadd.s32 %s221, 1
      %p225 = scmp.eq.s32.totalorder %s23, 3
      %p226 = scmp.ne.s32.totalorder %s221, %s223
      %p227 = scmp.eq.s32.totalorder %s23, 0
      %p228 = por %p226, %p227
      %p229 = scmp.ne.s32.totalorder %s221, %s223
      %p230 = scmp.eq.s32.totalorder %s28, 3
      %p231 = por %p229, %p230
      %p232 = scmp.ne.s32.totalorder %s223, %s224
      %p233 = scmp.eq.s32.totalorder %s28, 0
      %p234 = por %p232, %p233
      %p235 = scmp.ne.s32.totalorder %s223, %s224
      %p236 = scmp.eq.s32.totalorder %s29, 3
      %p237 = por %p235, %p236
      %p239 = scmp.ne.s32.totalorder %s224, %s238
      %p240 = scmp.eq.s32.totalorder %s29, 0
      %p241 = por %p239, %p240
      %s243 = sadd.s32 %s242, 1
      %p246 = scmp.eq.s32.totalorder %s23, 3
      %p247 = scmp.ne.s32.totalorder %s242, %s244
      %p248 = scmp.eq.s32.totalorder %s23, 0
      %p249 = por %p247, %p248
      %p250 = scmp.ne.s32.totalorder %s242, %s244
      %p251 = scmp.eq.s32.totalorder %s28, 3
      %p252 = por %p250, %p251
      %p253 = scmp.ne.s32.totalorder %s244, %s245
      %p254 = scmp.eq.s32.totalorder %s28, 0
      %p255 = por %p253, %p254
      %p256 = scmp.ne.s32.totalorder %s244, %s245
      %p257 = scmp.eq.s32.totalorder %s29, 3
      %p258 = por %p256, %p257
      %p260 = scmp.ne.s32.totalorder %s245, %s259
      %p261 = scmp.eq.s32.totalorder %s29, 0
      %p262 = por %p260, %p261
      %s264 = sadd.s32 %s263, 1
      %p267 = scmp.eq.s32.totalorder %s23, 3
      %p268 = scmp.ne.s32.totalorder %s263, %s265
      %p269 = scmp.eq.s32.totalorder %s23, 0
      %p270 = por %p268, %p269
      %p271 = scmp.ne.s32.totalorder %s263, %s265
      %p272 = scmp.eq.s32.totalorder %s28, 3
      %p273 = por %p271, %p272
      %p274 = scmp.ne.s32.totalorder %s265, %s266
      %p275 = scmp.eq.s32.totalorder %s28, 0
      %p276 = por %p274, %p275
      %p277 = scmp.ne.s32.totalorder %s265, %s266
      %p278 = scmp.eq.s32.totalorder %s29, 3
      %p279 = por %p277, %p278
      %p281 = scmp.ne.s32.totalorder %s266, %s280
      %p282 = scmp.eq.s32.totalorder %s29, 0
      %p283 = por %p281, %p282
      %s285 = sadd.s32 %s284, 1
      %p288 = scmp.eq.s32.totalorder %s23, 3
      %p289 = scmp.ne.s32.totalorder %s284, %s286
      %p290 = scmp.eq.s32.totalorder %s23, 0
      %p291 = por %p289, %p290
      %p292 = scmp.ne.s32.totalorder %s284, %s286
      %p293 = scmp.eq.s32.totalorder %s28, 3
      %p294 = por %p292, %p293
      %p295 = scmp.ne.s32.totalorder %s286, %s287
      %p296 = scmp.eq.s32.totalorder %s28, 0
      %p297 = por %p295, %p296
      %p298 = scmp.ne.s32.totalorder %s286, %s287
      %p299 = scmp.eq.s32.totalorder %s29, 3
      %p300 = por %p298, %p299
      %p302 = scmp.ne.s32.totalorder %s287, %s301
      %p303 = scmp.eq.s32.totalorder %s29, 0
      %p304 = por %p302, %p303
      %s306 = sadd.s32 %s305, 1
      %p309 = scmp.eq.s32.totalorder %s23, 3
      %p310 = scmp.ne.s32.totalorder %s305, %s307
      %p311 = scmp.eq.s32.totalorder %s23, 0
      %p312 = por %p310, %p311
      %p313 = scmp.ne.s32.totalorder %s305, %s307
      %p314 = scmp.eq.s32.totalorder %s28, 3
      %p315 = por %p313, %p314
      %p316 = scmp.ne.s32.totalorder %s307, %s308
      %p317 = scmp.eq.s32.totalorder %s28, 0
      %p318 = por %p316, %p317
      %p319 = scmp.ne.s32.totalorder %s307, %s308
      %p320 = scmp.eq.s32.totalorder %s29, 3
      %p321 = por %p319, %p320
      %p323 = scmp.ne.s32.totalorder %s308, %s322
      %p324 = scmp.eq.s32.totalorder %s29, 0
      %p325 = por %p323, %p324
      %s327 = sadd.s32 %s326, 1
      %p330 = scmp.eq.s32.totalorder %s23, 3
      %p331 = scmp.ne.s32.totalorder %s326, %s328
      %p332 = scmp.eq.s32.totalorder %s23, 0
      %p333 = por %p331, %p332
      %p334 = scmp.ne.s32.totalorder %s326, %s328
      %p335 = scmp.eq.s32.totalorder %s28, 3
      %p336 = por %p334, %p335
      %p337 = scmp.ne.s32.totalorder %s328, %s329
      %p338 = scmp.eq.s32.totalorder %s28, 0
      %p339 = por %p337, %p338
      %p340 = scmp.ne.s32.totalorder %s328, %s329
      %p341 = scmp.eq.s32.totalorder %s29, 3
      %p342 = por %p340, %p341
      %p344 = scmp.ne.s32.totalorder %s329, %s343
      %p345 = scmp.eq.s32.totalorder %s29, 0
      %p346 = por %p344, %p345
      %s347 = ssub.s32 %s31, %s38
      %s348 = ssub.s32 %s30, %s42
      %s349 = sor.u32 %s347, %s348
      %p350 = scmp.eq.s32.totalorder %s349, 0
      %s352 = sadd.s32 %s351, 1
      %s353 = scalar_select %p350, %s351, %s352
      %p356 = pneg %p350
      %p357 = scmp.eq.s32.totalorder %s23, 3
      %p358 = por %p356, %p357
      %p359 = scmp.ne.s32.totalorder %s351, %s354
      %p360 = scmp.eq.s32.totalorder %s23, 0
      %p361 = por %p359, %p360
      %p362 = scmp.ne.s32.totalorder %s351, %s354
      %p363 = scmp.eq.s32.totalorder %s28, 3
      %p364 = por %p362, %p363
      %p365 = scmp.ne.s32.totalorder %s354, %s355
      %p366 = scmp.eq.s32.totalorder %s28, 0
      %p367 = por %p365, %p366
      %p368 = scmp.ne.s32.totalorder %s354, %s355
      %p369 = scmp.eq.s32.totalorder %s29, 3
      %p370 = por %p368, %p369
      %p372 = scmp.ne.s32.totalorder %s355, %s371
      %p373 = scmp.eq.s32.totalorder %s29, 0
      %p374 = por %p372, %p373
      %p375 = scmp.le.s32.totalorder 1, %s23
      %p376 = scmp.lt.s32.totalorder %s23, 5
      %p377 = pnand %p375, %p376
      %p378 = pneg %p377
      // Predicated region
      $region9: #{tpu_custom_call.1} parent=5 // pred_check
        _
      $region10: #{tpu_custom_call.1} parent=5 // pred_check_branch
        %380 = sbr.rel (%p377) target = $region12
      $region11: #{tpu_custom_call.1} parent=5 // pred_region
        %s381 = ssub.s32 %s23, 1
        // Predicated region
        $region13: #{tpu_custom_call.1} parent=11 // pred_check
          %p382 = pneg %p108
        $region14: #{tpu_custom_call.1} parent=11 // pred_check_branch
          %384 = sbr.rel (%p382) target = $region16
        $region15: #{tpu_custom_call.1} parent=11 // pred_region
          _
        $region16: #{tpu_custom_call.1} parent=11 // pred_fallthru
          _
        // Predicated region
        $region17: #{tpu_custom_call.1} parent=11 // pred_check
          %p385 = pneg %p129
        $region18: #{tpu_custom_call.1} parent=11 // pred_check_branch
          %387 = sbr.rel (%p385) target = $region20
        $region19: #{tpu_custom_call.1} parent=11 // pred_region
          _
        $region20: #{tpu_custom_call.1} parent=11 // pred_fallthru
          _
        // Predicated region
        $region21: #{tpu_custom_call.1} parent=11 // pred_check
          %p388 = pneg %p150
        $region22: #{tpu_custom_call.1} parent=11 // pred_check_branch
          %390 = sbr.rel (%p388) target = $region24
        $region23: #{tpu_custom_call.1} parent=11 // pred_region
          _
        $region24: #{tpu_custom_call.1} parent=11 // pred_fallthru
          _
        // Predicated region
        $region25: #{tpu_custom_call.1} parent=11 // pred_check
          %p391 = pneg %p171
        $region26: #{tpu_custom_call.1} parent=11 // pred_check_branch
          %393 = sbr.rel (%p391) target = $region28
        $region27: #{tpu_custom_call.1} parent=11 // pred_region
          _
        $region28: #{tpu_custom_call.1} parent=11 // pred_fallthru
          _
        // Predicated region
        $region29: #{tpu_custom_call.1} parent=11 // pred_check
          %p394 = pneg %p192
        $region30: #{tpu_custom_call.1} parent=11 // pred_check_branch
          %396 = sbr.rel (%p394) target = $region32
        $region31: #{tpu_custom_call.1} parent=11 // pred_region
          _
        $region32: #{tpu_custom_call.1} parent=11 // pred_fallthru
          _
        // Predicated region
        $region33: #{tpu_custom_call.1} parent=11 // pred_check
          %p397 = pneg %p213
        $region34: #{tpu_custom_call.1} parent=11 // pred_check_branch
          %399 = sbr.rel (%p397) target = $region36
        $region35: #{tpu_custom_call.1} parent=11 // pred_region
          _
        $region36: #{tpu_custom_call.1} parent=11 // pred_fallthru
          _
        // Predicated region
        $region37: #{tpu_custom_call.1} parent=11 // pred_check
          %p400 = pneg %p234
        $region38: #{tpu_custom_call.1} parent=11 // pred_check_branch
          %402 = sbr.rel (%p400) target = $region40
        $region39: #{tpu_custom_call.1} parent=11 // pred_region
          _
        $region40: #{tpu_custom_call.1} parent=11 // pred_fallthru
          _
        // Predicated region
        $region41: #{tpu_custom_call.1} parent=11 // pred_check
          %p403 = pneg %p255
        $region42: #{tpu_custom_call.1} parent=11 // pred_check_branch
          %405 = sbr.rel (%p403) target = $region44
        $region43: #{tpu_custom_call.1} parent=11 // pred_region
          _
        $region44: #{tpu_custom_call.1} parent=11 // pred_fallthru
          _
        // Predicated region
        $region45: #{tpu_custom_call.1} parent=11 // pred_check
          %p406 = pneg %p276
        $region46: #{tpu_custom_call.1} parent=11 // pred_check_branch
          %408 = sbr.rel (%p406) target = $region48
        $region47: #{tpu_custom_call.1} parent=11 // pred_region
          _
        $region48: #{tpu_custom_call.1} parent=11 // pred_fallthru
          _
        // Predicated region
        $region49: #{tpu_custom_call.1} parent=11 // pred_check
          %p409 = pneg %p297
        $region50: #{tpu_custom_call.1} parent=11 // pred_check_branch
          %411 = sbr.rel (%p409) target = $region52
        $region51: #{tpu_custom_call.1} parent=11 // pred_region
          _
        $region52: #{tpu_custom_call.1} parent=11 // pred_fallthru
          _
        // Predicated region
        $region53: #{tpu_custom_call.1} parent=11 // pred_check
          %p412 = pneg %p318
        $region54: #{tpu_custom_call.1} parent=11 // pred_check_branch
          %414 = sbr.rel (%p412) target = $region56
        $region55: #{tpu_custom_call.1} parent=11 // pred_region
          _
        $region56: #{tpu_custom_call.1} parent=11 // pred_fallthru
          _
        // Predicated region
        $region57: #{tpu_custom_call.1} parent=11 // pred_check
          %p415 = pneg %p339
        $region58: #{tpu_custom_call.1} parent=11 // pred_check_branch
          %417 = sbr.rel (%p415) target = $region60
        $region59: #{tpu_custom_call.1} parent=11 // pred_region
          _
        $region60: #{tpu_custom_call.1} parent=11 // pred_fallthru
          _
      $region12: #{tpu_custom_call.1} parent=5 // pred_fallthru
        _
      %p418 = scmp.lt.s32.totalorder %s23, 4
      // Predicated region
      $region61: #{tpu_custom_call.1} parent=5 // pred_check
        %p419 = pneg %p418
      $region62: #{tpu_custom_call.1} parent=5 // pred_check_branch
        %421 = sbr.rel (%p419) target = $region64
      $region63: #{tpu_custom_call.1} parent=5 // pred_region
        // Predicated region
        $region65: #{tpu_custom_call.1} parent=63 // pred_check
          %p422 = pneg %p55
        $region66: #{tpu_custom_call.1} parent=63 // pred_check_branch
          %424 = sbr.rel (%p422) target = $region68
        $region67: #{tpu_custom_call.1} parent=63 // pred_region
          %p425 = scmp.lt.s32.totalorder %s30, 1
          %s426 = scalar_select %p425, %s30, 1
          %s427 = smul.addr %s426, 8
          %s428 = scalar_lea.vmem %s0, %s427
        $region68: #{tpu_custom_call.1} parent=63 // pred_fallthru
          _
        // Predicated region
        $region69: #{tpu_custom_call.1} parent=63 // pred_check
          %p429 = pneg %p81
        $region70: #{tpu_custom_call.1} parent=63 // pred_check_branch
          %431 = sbr.rel (%p429) target = $region72
        $region71: #{tpu_custom_call.1} parent=63 // pred_region
          %p432 = scmp.lt.s32.totalorder %s30, 1
          %s433 = scalar_select %p432, %s30, 1
          %s434 = scalar_lea.vmem %s1, %s433
        $region72: #{tpu_custom_call.1} parent=63 // pred_fallthru
          _
      $region64: #{tpu_custom_call.1} parent=5 // pred_fallthru
        _
      %p435 = scmp.le.s32.totalorder 1, %s23
      %p436 = scmp.lt.s32.totalorder %s23, 5
      %p437 = pnand %p435, %p436
      %p438 = pneg %p437
      // Predicated region
      $region73: #{tpu_custom_call.1} parent=5 // pred_check
        _
      $region74: #{tpu_custom_call.1} parent=5 // pred_check_branch
        %440 = sbr.rel (%p437) target = $region76
      $region75: #{tpu_custom_call.1} parent=5 // pred_region
        %s441 = ssub.s32 %s23, 1
        %p442 = scmp.lt.s32.totalorder %s32, 1
        %s443 = scalar_select %p442, %s32, 1
        %s444 = smul.addr %s443, 8
        %s445 = scalar_lea.vmem %s0, %s444
        %p446 = pneg %p61
        %p447 = pneg %p58
        %p448 = scmp.lt.s32.totalorder %s32, 1
        %s449 = scalar_select %p448, %s32, 1
        %s450 = scalar_lea.vmem %s1, %s449
        %p451 = pneg %p87
        %p452 = pneg %p84
        %p453 = pneg %p108
        %p454 = pneg %p105
        %p455 = pneg %p129
        %p456 = pneg %p126
        %p457 = pneg %p150
        %p458 = pneg %p147
        %p459 = pneg %p171
        %p460 = pneg %p168
        %p461 = pneg %p192
        %p462 = pneg %p189
        %p463 = pneg %p213
        %p464 = pneg %p210
        %p465 = pneg %p234
        %p466 = pneg %p231
        %p467 = pneg %p255
        %p468 = pneg %p252
        %p469 = pneg %p276
        %p470 = pneg %p273
        %p471 = pneg %p297
        %p472 = pneg %p294
        %p473 = pneg %p318
        %p474 = pneg %p315
        %p475 = pneg %p339
        %p476 = pneg %p336
        %p477 = pneg %p367
        %p478 = pneg %p364
        %s479 = sand.u32 %s354, 1
        %s480 = scalar_lea.sflag [#allocation4], %s479
        %s481 = sand.u32 %s354, 1
        %s482 = smul.addr %s481, 8
        %s483 = scalar_lea.vmem [#allocation3], %s482
        %p484 = scmp.lt.s32.totalorder %s32, 1
        %s485 = scalar_select %p484, %s32, 1
        %s486 = smul.addr %s485, 8
        %s487 = scalar_lea.vmem %s0, %s486
        %p488 = scmp.lt.s32.totalorder %s32, 1
        %s489 = scalar_select %p488, %s32, 1
        %s490 = scalar_lea.vmem %s1, %s489
        %p491 = scmp.eq.s32.totalorder %s33, 0
        // Predicated region
        $region77: #{tpu_custom_call.1} parent=75 // pred_check
          %p492 = pneg %p491
        $region78: #{tpu_custom_call.1} parent=75 // pred_check_branch
          %494 = sbr.rel (%p492) target = $region80
        $region79: #{tpu_custom_call.1} parent=75 // pred_region
          %v495 = vld [vmem:[%s487] sm:$0xff]
          %vm496 = vcmask 523264
          %497 = vst.msk [vmem:[#allocation2] sm:$0xff] %vm496, %v495
        $region80: #{tpu_custom_call.1} parent=75 // pred_fallthru
          _
        %v498 = vld [vmem:[#allocation2] sm:$0xff]
        %s499 = smul.u32 %s33, 16
        %s500 = smul.addr %s499, 8
        %s501 = scalar_lea.vmem %s2, %s500
        %v502 = vld [vmem:[%s501] sm:$0xff]
        %v503 = vld [vmem:[%s501 + $0x8] sm:$0xff]
        %v504 = vld [vmem:[%s501 + $0x10] sm:$0xff]
        %v505 = vld [vmem:[%s501 + $0x18] sm:$0xff]
        %v506 = vld [vmem:[%s501 + $0x20] sm:$0xff]
        %v507 = vld [vmem:[%s501 + $0x28] sm:$0xff]
        %v508 = vld [vmem:[%s501 + $0x30] sm:$0xff]
        %v509 = vld [vmem:[%s501 + $0x38] sm:$0xff]
        %v510 = vld [vmem:[%s501 + $0x40] sm:$0xff]
        %v511 = vld [vmem:[%s501 + $0x48] sm:$0xff]
        %v512 = vld [vmem:[%s501 + $0x50] sm:$0xff]
        %v513 = vld [vmem:[%s501 + $0x58] sm:$0xff]
        %v514 = vld [vmem:[%s501 + $0x60] sm:$0xff]
        %v515 = vld [vmem:[%s501 + $0x68] sm:$0xff]
        %v516 = vld [vmem:[%s501 + $0x70] sm:$0xff]
        %v517 = vld [vmem:[%s501 + $0x78] sm:$0xff]
        %s518 = smul.u32 %s33, 2
        %s519 = scalar_lea.vmem %s3, %s518
        %v520 = vld [vmem:[%s519] sm:$0x3]
        %v522 = vperm.slane %v520, 0
        %v523 = vperm.slane %v520, 1
        %vm526 = vcmask 523264
        %v528 = vsel %vm526, %v498, 0
        %530 = vmatpush.msra.mxu0 0.0
        %531 = vmatpush.msra.mxu0 0.0
        %532 = vmatpush.msra.mxu0 0.0
        %533 = vmatpush.msra.mxu0 0.0
        %534 = vmatpush.msra.mxu0 0.0
        %535 = vmatpush.msra.mxu0 0.0
        %536 = vmatpush.msra.mxu0 0.0
        %537 = vmatpush.msra.mxu0 0.0
        %538 = vmatpush.msra.mxu0 %v516
        %539 = vmatpush.msra.mxu0 %v514
        %540 = vmatpush.msra.mxu0 %v512
        %541 = vmatpush.msra.mxu0 %v510
        %542 = vmatpush.msra.mxu0 %v508
        %543 = vmatpush.msra.mxu0 %v506
        %544 = vmatpush.msra.mxu0 %v504
        %545 = vmatpush.msra.mxu0 %v502
        %546 = vmatmul.f32.gmra.mxu0 %v528
        %v547 = vpop.f32.mrf.mxu0
        %v548 = vadd.f32 %v522, %v547
        %549 = vdwg.mxu0
        %550 = vmatpush.msra.mxu0 0.0
        %551 = vmatpush.msra.mxu0 0.0
        %552 = vmatpush.msra.mxu0 0.0
        %553 = vmatpush.msra.mxu0 0.0
        %554 = vmatpush.msra.mxu0 0.0
        %555 = vmatpush.msra.mxu0 0.0
        %556 = vmatpush.msra.mxu0 0.0
        %557 = vmatpush.msra.mxu0 0.0
        %558 = vmatpush.msra.mxu0 %v517
        %559 = vmatpush.msra.mxu0 %v515
        %560 = vmatpush.msra.mxu0 %v513
        %561 = vmatpush.msra.mxu0 %v511
        %562 = vmatpush.msra.mxu0 %v509
        %563 = vmatpush.msra.mxu0 %v507
        %564 = vmatpush.msra.mxu0 %v505
        %565 = vmatpush.msra.mxu0 %v503
        %566 = vmatmul.f32.gmra.mxu0 %v528
        %v567 = vpop.f32.mrf.mxu0
        %v568 = vadd.f32 %v523, %v567
        %569 = vdwg.mxu0
        %v570 = vld [vmem:[%s490] sm:$0x1]
        %v572 = vperm.slane %v570, 0
        %575 = vrot.lane.b32.xlu0 %v548, 64
        %v576 = vpop.permute.xlu0 %575
        %vm577 = vcmask 261120
        %v578 = vsel %vm577, %v548, 0
        %v580 = vsel %vm577, %v576, 0
        %582 = vmatpush.xpose.msra.mxu0 0.0
        %583 = vmatpush.xpose.msra.mxu0 0.0
        %584 = vmatpush.xpose.msra.mxu0 0.0
        %585 = vmatpush.xpose.msra.mxu0 0.0
        %586 = vmatpush.xpose.msra.mxu0 0.0
        %587 = vmatpush.xpose.msra.mxu0 0.0
        %588 = vmatpush.xpose.msra.mxu0 0.0
        %589 = vmatpush.xpose.msra.mxu0 0.0
        %590 = vmatpush.xpose.msra.mxu0 0.0
        %591 = vmatpush.xpose.msra.mxu0 0.0
        %592 = vmatpush.xpose.msra.mxu0 0.0
        %593 = vmatpush.xpose.msra.mxu0 0.0
        %594 = vmatpush.xpose.msra.mxu0 0.0
        %595 = vmatpush.xpose.msra.mxu0 0.0
        %596 = vmatpush.xpose.msra.mxu0 0.0
        %597 = vmatpush.xpose.msra.mxu0 %v580
        %598 = vmatmul.f32.gmra.mxu0 %v578
        %v599 = vpop.f32.mrf.mxu0
        %v600 = vadd.f32 %v572, %v599
        %601 = vdwg.mxu0
        %vm602 = vcmask 64512
        %v603 = vsel %vm602, %v600, -inf
        %604 = vmax.xlane.f32.xlu0 %v603
        %v605 = vpop.xlane.xlu0 %604
        %v606 = vsub.f32 %v600, %v605
        %v607 = vmul.f32 %v606, 1.442695
        %v608 = vpow.pop %v607
        %v609 = vsel %vm602, %v608, 0.0
        %610 = vadd.xlane.f32.xlu0 %v609
        %v611 = vpop.xlane.xlu0 %610
        %v612 = vrcp.pop %v611
        %v613 = vmul.f32 %v611, %v612
        %v614 = vsub.f32 1.0, %v613
        %v615 = vmul.f32 %v612, %v614
        %v616 = vadd.f32 %v612, %v615
        %vm617 = vweird.f32 %v611
        %vm618 = vweird.f32 %v612
        %vm619 = vmor %vm617, %vm618
        %v620 = vsel %vm619, %v612, %v616
        %v621 = vand.u32 2147483647, %v611
        %vm622 = vcmp.eq.f32.partialorder %v621, 8.507059e+37
        %v623 = vand.u32 %v611, 2147483648
        %v624 = vor.u32 1.1754944e-38, %v623
        %v625 = vsel %vm622, %v624, %v620
        %v626 = vmul.f32 %v608, %v625
        %v628 = vsel %vm602, %v626, 0
        %630 = vmatpush.msra.mxu0 0.0
        %631 = vmatpush.msra.mxu0 0.0
        %632 = vmatpush.msra.mxu0 0.0
        %633 = vmatpush.msra.mxu0 0.0
        %634 = vmatpush.msra.mxu0 0.0
        %635 = vmatpush.msra.mxu0 0.0
        %636 = vmatpush.msra.mxu0 0.0
        %637 = vmatpush.msra.mxu0 0.0
        %638 = vmatpush.msra.mxu0 0.0
        %639 = vmatpush.msra.mxu0 0.0
        %640 = vmatpush.msra.mxu0 0.0
        %641 = vmatpush.msra.mxu0 0.0
        %642 = vmatpush.msra.mxu0 0.0
        %643 = vmatpush.msra.mxu0 0.0
        %644 = vmatpush.msra.mxu0 0.0
        %645 = vmatpush.msra.mxu0 %v568
        %646 = vmatmul.f32.gmra.mxu0 %v628
        %v647 = vpop.f32.mrf.mxu0
        %v648 = vadd.f32 0.0, %v647
        %649 = vdwg.mxu0
        %650 = vrot.lane.b32.xlu0 %v548, 96
        %v651 = vpop.permute.xlu0 %650
        %652 = vrot.lane.b32.xlu0 %v548, 32
        %v653 = vpop.permute.xlu0 %652
        %v654 = vsel %vm577, %v651, 0
        %v656 = vsel %vm577, %v653, 0
        %658 = vmatpush.xpose.msra.mxu0 0.0
        %659 = vmatpush.xpose.msra.mxu0 0.0
        %660 = vmatpush.xpose.msra.mxu0 0.0
        %661 = vmatpush.xpose.msra.mxu0 0.0
        %662 = vmatpush.xpose.msra.mxu0 0.0
        %663 = vmatpush.xpose.msra.mxu0 0.0
        %664 = vmatpush.xpose.msra.mxu0 0.0
        %665 = vmatpush.xpose.msra.mxu0 0.0
        %666 = vmatpush.xpose.msra.mxu0 0.0
        %667 = vmatpush.xpose.msra.mxu0 0.0
        %668 = vmatpush.xpose.msra.mxu0 0.0
        %669 = vmatpush.xpose.msra.mxu0 0.0
        %670 = vmatpush.xpose.msra.mxu0 0.0
        %671 = vmatpush.xpose.msra.mxu0 0.0
        %672 = vmatpush.xpose.msra.mxu0 0.0
        %673 = vmatpush.xpose.msra.mxu0 %v656
        %674 = vmatmul.f32.gmra.mxu0 %v654
        %v675 = vpop.f32.mrf.mxu0
        %v676 = vadd.f32 %v572, %v675
        %677 = vdwg.mxu0
        %v678 = vsel %vm602, %v676, -inf
        %679 = vmax.xlane.f32.xlu0 %v678
        %v680 = vpop.xlane.xlu0 %679
        %v681 = vsub.f32 %v676, %v680
        %v682 = vmul.f32 %v681, 1.442695
        %v683 = vpow.pop %v682
        %v684 = vsel %vm602, %v683, 0.0
        %685 = vadd.xlane.f32.xlu0 %v684
        %v686 = vpop.xlane.xlu0 %685
        %v687 = vrcp.pop %v686
        %v688 = vmul.f32 %v686, %v687
        %v689 = vsub.f32 1.0, %v688
        %v690 = vmul.f32 %v687, %v689
        %v691 = vadd.f32 %v687, %v690
        %vm692 = vweird.f32 %v686
        %vm693 = vweird.f32 %v687
        %vm694 = vmor %vm692, %vm693
        %v695 = vsel %vm694, %v687, %v691
        %v696 = vand.u32 2147483647, %v686
        %vm697 = vcmp.eq.f32.partialorder %v696, 8.507059e+37
        %v698 = vand.u32 %v686, 2147483648
        %v699 = vor.u32 1.1754944e-38, %v698
        %v700 = vsel %vm697, %v699, %v695
        %v701 = vmul.f32 %v683, %v700
        %703 = vrot.lane.b32.xlu0 %v568, 96
        %v704 = vpop.permute.xlu0 %703
        %v707 = vsel %vm602, %v701, 0
        %709 = vmatpush.msra.mxu0 0.0
        %710 = vmatpush.msra.mxu0 0.0
        %711 = vmatpush.msra.mxu0 0.0
        %712 = vmatpush.msra.mxu0 0.0
        %713 = vmatpush.msra.mxu0 0.0
        %714 = vmatpush.msra.mxu0 0.0
        %715 = vmatpush.msra.mxu0 0.0
        %716 = vmatpush.msra.mxu0 0.0
        %717 = vmatpush.msra.mxu0 0.0
        %718 = vmatpush.msra.mxu0 0.0
        %719 = vmatpush.msra.mxu0 0.0
        %720 = vmatpush.msra.mxu0 0.0
        %721 = vmatpush.msra.mxu0 0.0
        %722 = vmatpush.msra.mxu0 0.0
        %723 = vmatpush.msra.mxu0 0.0
        %724 = vmatpush.msra.mxu0 %v704
        %725 = vmatmul.f32.gmra.mxu0 %v707
        %v726 = vpop.f32.mrf.mxu0
        %v727 = vadd.f32 0.0, %v726
        %728 = vdwg.mxu0
        %730 = vrot.lane.b32.xlu0 %v727, 32
        %v731 = vpop.permute.xlu0 %730
        %v733 = vsel %vm577, %v648, %v731
        %s734 = smul.u32 %s33, 64
        %s735 = scalar_lea.vmem %s4, %s734
        %v736 = vld [vmem:[%s735] sm:$0xff]
        %v737 = vld [vmem:[%s735 + $0x8] sm:$0xff]
        %v738 = vld [vmem:[%s735 + $0x10] sm:$0xff]
        %v739 = vld [vmem:[%s735 + $0x18] sm:$0xff]
        %v740 = vld [vmem:[%s735 + $0x20] sm:$0xff]
        %v741 = vld [vmem:[%s735 + $0x28] sm:$0xff]
        %v742 = vld [vmem:[%s735 + $0x30] sm:$0xff]
        %v743 = vld [vmem:[%s735 + $0x38] sm:$0xff]
        %s744 = scalar_lea.vmem %s5, %s33
        %v745 = vld [vmem:[%s744] sm:$0x1]
        %v747 = vperm.slane %v745, 0
        %v750 = vsel %vm526, %v733, 0
        %752 = vmatpush.msra.mxu0 0.0
        %753 = vmatpush.msra.mxu0 0.0
        %754 = vmatpush.msra.mxu0 0.0
        %755 = vmatpush.msra.mxu0 0.0
        %756 = vmatpush.msra.mxu0 0.0
        %757 = vmatpush.msra.mxu0 0.0
        %758 = vmatpush.msra.mxu0 0.0
        %759 = vmatpush.msra.mxu0 0.0
        %760 = vmatpush.msra.mxu0 %v743
        %761 = vmatpush.msra.mxu0 %v742
        %762 = vmatpush.msra.mxu0 %v741
        %763 = vmatpush.msra.mxu0 %v740
        %764 = vmatpush.msra.mxu0 %v739
        %765 = vmatpush.msra.mxu0 %v738
        %766 = vmatpush.msra.mxu0 %v737
        %767 = vmatpush.msra.mxu0 %v736
        %768 = vmatmul.f32.gmra.mxu0 %v750
        %v769 = vpop.f32.mrf.mxu0
        %v770 = vadd.f32 %v747, %v769
        %771 = vdwg.mxu0
        %s772 = scalar_lea.vmem %s6, %s33
        %v773 = vld [vmem:[%s772] sm:$0x1]
        %s774 = scalar_lea.vmem %s7, %s33
        %v775 = vld [vmem:[%s774] sm:$0x1]
        %v776 = vsel %vm526, %v770, 0.0
        %777 = vadd.xlane.f32.xlu0 %v776
        %v778 = vpop.xlane.xlu0 %777
        %v779 = vrcp.pop 64.0
        %v780 = vmul.f32 64.0, %v779
        %v781 = vsub.f32 1.0, %v780
        %v782 = vmul.f32 %v779, %v781
        %v783 = vadd.f32 %v779, %v782
        %vm784 = vweird.f32 %v779
        %v785 = vsel %vm784, %v779, %v783
        %v786 = vmul.f32 %v778, %v785
        %v787 = vsub.f32 %v770, %v786
        %v788 = vmul.f32 %v787, %v787
        %v789 = vsel %vm526, %v788, 0.0
        %790 = vadd.xlane.f32.xlu0 %v789
        %v791 = vpop.xlane.xlu0 %790
        %v792 = vmul.f32 %v791, %v785
        %v793 = vadd.f32 %v792, 1e-12
        %v794 = vrsqrt.pop %v793
        %v795 = vmul.f32 %v794, %v793
        %v796 = vmul.f32 %v795, %v794
        %v797 = vmul.f32 0.5, %v796
        %v798 = vsub.f32 1.5, %v797
        %v799 = vmul.f32 %v794, %v798
        %vm800 = vweird.f32 %v793
        %vm801 = vweird.f32 %v794
        %vm802 = vmor %vm800, %vm801
        %v803 = vsel %vm802, %v794, %v799
        %v804 = vmul.f32 %v787, %v803
        %v806 = vperm.slane %v773, 0
        %v808 = vmul.f32 %v804, %v806
        %v810 = vperm.slane %v775, 0
        %v812 = vadd.f32 %v808, %v810
        %v813 = vadd.f32 %v812, %v498
        %s814 = smul.addr %s499, 8
        %s815 = scalar_lea.vmem %s8, %s814
        %v816 = vld [vmem:[%s815] sm:$0xff]
        %v817 = vld [vmem:[%s815 + $0x8] sm:$0xff]
        %v818 = vld [vmem:[%s815 + $0x10] sm:$0xff]
        %v819 = vld [vmem:[%s815 + $0x18] sm:$0xff]
        %v820 = vld [vmem:[%s815 + $0x20] sm:$0xff]
        %v821 = vld [vmem:[%s815 + $0x28] sm:$0xff]
        %v822 = vld [vmem:[%s815 + $0x30] sm:$0xff]
        %v823 = vld [vmem:[%s815 + $0x38] sm:$0xff]
        %v824 = vld [vmem:[%s815 + $0x40] sm:$0xff]
        %v825 = vld [vmem:[%s815 + $0x48] sm:$0xff]
        %v826 = vld [vmem:[%s815 + $0x50] sm:$0xff]
        %v827 = vld [vmem:[%s815 + $0x58] sm:$0xff]
        %v828 = vld [vmem:[%s815 + $0x60] sm:$0xff]
        %v829 = vld [vmem:[%s815 + $0x68] sm:$0xff]
        %v830 = vld [vmem:[%s815 + $0x70] sm:$0xff]
        %v831 = vld [vmem:[%s815 + $0x78] sm:$0xff]
        %s832 = scalar_lea.vmem %s9, %s518
        %v833 = vld [vmem:[%s832] sm:$0x3]
        %v835 = vperm.slane %v833, 0
        %v836 = vperm.slane %v833, 1
        %v840 = vsel %vm526, %v813, 0
        %842 = vmatpush.msra.mxu0 0.0
        %843 = vmatpush.msra.mxu0 0.0
        %844 = vmatpush.msra.mxu0 0.0
        %845 = vmatpush.msra.mxu0 0.0
        %846 = vmatpush.msra.mxu0 0.0
        %847 = vmatpush.msra.mxu0 0.0
        %848 = vmatpush.msra.mxu0 0.0
        %849 = vmatpush.msra.mxu0 0.0
        %850 = vmatpush.msra.mxu0 %v830
        %851 = vmatpush.msra.mxu0 %v828
        %852 = vmatpush.msra.mxu0 %v826
        %853 = vmatpush.msra.mxu0 %v824
        %854 = vmatpush.msra.mxu0 %v822
        %855 = vmatpush.msra.mxu0 %v820
        %856 = vmatpush.msra.mxu0 %v818
        %857 = vmatpush.msra.mxu0 %v816
        %858 = vmatmul.f32.gmra.mxu0 %v840
        %v859 = vpop.f32.mrf.mxu0
        %v860 = vadd.f32 %v835, %v859
        %861 = vdwg.mxu0
        %862 = vmatpush.msra.mxu0 0.0
        %863 = vmatpush.msra.mxu0 0.0
        %864 = vmatpush.msra.mxu0 0.0
        %865 = vmatpush.msra.mxu0 0.0
        %866 = vmatpush.msra.mxu0 0.0
        %867 = vmatpush.msra.mxu0 0.0
        %868 = vmatpush.msra.mxu0 0.0
        %869 = vmatpush.msra.mxu0 0.0
        %870 = vmatpush.msra.mxu0 %v831
        %871 = vmatpush.msra.mxu0 %v829
        %872 = vmatpush.msra.mxu0 %v827
        %873 = vmatpush.msra.mxu0 %v825
        %874 = vmatpush.msra.mxu0 %v823
        %875 = vmatpush.msra.mxu0 %v821
        %876 = vmatpush.msra.mxu0 %v819
        %877 = vmatpush.msra.mxu0 %v817
        %878 = vmatmul.f32.gmra.mxu0 %v840
        %v879 = vpop.f32.mrf.mxu0
        %v880 = vadd.f32 %v836, %v879
        %881 = vdwg.mxu0
        %v882 = vmul.f32 %v860, 0.5
        %v883 = vmul.f32 %v880, 0.5
        %v884 = vmul.f32 %v860, 0.70710677
        %v885 = vmul.f32 %v880, 0.70710677
        %v886 = vand.u32 2147483647, %v884
        %v887 = vand.u32 2147483647, %v885
        %v888 = vmul.f32 %v886, 0.3275911
        %v889 = vmul.f32 %v887, 0.3275911
        %v890 = vadd.f32 %v888, 1.0
        %v891 = vadd.f32 %v889, 1.0
        %v892 = vrcp.pop %v890
        %v893 = vmul.f32 %v890, %v892
        %v894 = vsub.f32 1.0, %v893
        %v895 = vmul.f32 %v892, %v894
        %v896 = vadd.f32 %v892, %v895
        %vm897 = vweird.f32 %v890
        %vm898 = vweird.f32 %v892
        %vm899 = vmor %vm897, %vm898
        %v900 = vsel %vm899, %v892, %v896
        %v901 = vand.u32 2147483647, %v890
        %vm902 = vcmp.eq.f32.partialorder %v901, 8.507059e+37
        %v903 = vand.u32 %v890, 2147483648
        %v904 = vor.u32 1.1754944e-38, %v903
        %v905 = vsel %vm902, %v904, %v900
        %v906 = vmul.f32 1.0, %v905
        %v907 = vrcp.pop %v891
        %v908 = vmul.f32 %v891, %v907
        %v909 = vsub.f32 1.0, %v908
        %v910 = vmul.f32 %v907, %v909
        %v911 = vadd.f32 %v907, %v910
        %vm912 = vweird.f32 %v891
        %vm913 = vweird.f32 %v907
        %vm914 = vmor %vm912, %vm913
        %v915 = vsel %vm914, %v907, %v911
        %v916 = vand.u32 2147483647, %v891
        %vm917 = vcmp.eq.f32.partialorder %v916, 8.507059e+37
        %v918 = vand.u32 %v891, 2147483648
        %v919 = vor.u32 1.1754944e-38, %v918
        %v920 = vsel %vm917, %v919, %v915
        %v921 = vmul.f32 1.0, %v920
        %v922 = vmul.f32 %v906, 1.0614054
        %v923 = vmul.f32 %v921, 1.0614054
        %v924 = vadd.f32 %v922, -1.4531521
        %v925 = vadd.f32 %v923, -1.4531521
        %v926 = vmul.f32 %v924, %v906
        %v927 = vmul.f32 %v925, %v921
        %v928 = vadd.f32 %v926, 1.4214138
        %v929 = vadd.f32 %v927, 1.4214138
        %v930 = vmul.f32 %v928, %v906
        %v931 = vmul.f32 %v929, %v921
        %v932 = vadd.f32 %v930, -0.28449672
        %v933 = vadd.f32 %v931, -0.28449672
        %v934 = vmul.f32 %v932, %v906
        %v935 = vmul.f32 %v933, %v921
        %v936 = vadd.f32 %v934, 0.2548296
        %v937 = vadd.f32 %v935, 0.2548296
        %v938 = vmul.f32 %v936, %v906
        %v939 = vmul.f32 %v937, %v921
        %v940 = vsub.f32 0.0, %v886
        %v941 = vsub.f32 0.0, %v887
        %v942 = vmul.f32 %v940, %v886
        %v943 = vmul.f32 %v941, %v887
        %v944 = vmul.f32 %v942, 1.442695
        %v945 = vpow.pop %v944
        %v946 = vmul.f32 %v943, 1.442695
        %v947 = vpow.pop %v946
        %v948 = vmul.f32 %v938, %v945
        %v949 = vmul.f32 %v939, %v947
        %v950 = vsub.f32 1.0, %v948
        %v951 = vsub.f32 1.0, %v949
        %vm952 = vcmp.ge.f32.partialorder %v884, 0.0
        %vm953 = vcmp.ge.f32.partialorder %v885, 0.0
        %v954 = vsub.f32 0.0, %v950
        %v955 = vsub.f32 0.0, %v951
        %v956 = vsel %vm952, %v950, %v954
        %v957 = vsel %vm953, %v951, %v955
        %v958 = vadd.f32 %v956, 1.0
        %v959 = vadd.f32 %v957, 1.0
        %v960 = vmul.f32 %v882, %v958
        %v961 = vmul.f32 %v883, %v959
        %s962 = smul.u32 %s33, 256
        %s963 = scalar_lea.vmem %s10, %s962
        %v964 = vld [vmem:[%s963] sm:$0xff]
        %v965 = vld [vmem:[%s963 + $0x8] sm:$0xff]
        %v966 = vld [vmem:[%s963 + $0x10] sm:$0xff]
        %v967 = vld [vmem:[%s963 + $0x18] sm:$0xff]
        %v968 = vld [vmem:[%s963 + $0x20] sm:$0xff]
        %v969 = vld [vmem:[%s963 + $0x28] sm:$0xff]
        %v970 = vld [vmem:[%s963 + $0x30] sm:$0xff]
        %v971 = vld [vmem:[%s963 + $0x38] sm:$0xff]
        %v972 = vld [vmem:[%s963 + $0x40] sm:$0xff]
        %v973 = vld [vmem:[%s963 + $0x48] sm:$0xff]
        %v974 = vld [vmem:[%s963 + $0x50] sm:$0xff]
        %v975 = vld [vmem:[%s963 + $0x58] sm:$0xff]
        %v976 = vld [vmem:[%s963 + $0x60] sm:$0xff]
        %v977 = vld [vmem:[%s963 + $0x68] sm:$0xff]
        %v978 = vld [vmem:[%s963 + $0x70] sm:$0xff]
        %v979 = vld [vmem:[%s963 + $0x78] sm:$0xff]
        %v980 = vld [vmem:[%s963 + $0x80] sm:$0xff]
        %v981 = vld [vmem:[%s963 + $0x88] sm:$0xff]
        %v982 = vld [vmem:[%s963 + $0x90] sm:$0xff]
        %v983 = vld [vmem:[%s963 + $0x98] sm:$0xff]
        %v984 = vld [vmem:[%s963 + $0xa0] sm:$0xff]
        %v985 = vld [vmem:[%s963 + $0xa8] sm:$0xff]
        %v986 = vld [vmem:[%s963 + $0xb0] sm:$0xff]
        %v987 = vld [vmem:[%s963 + $0xb8] sm:$0xff]
        %v988 = vld [vmem:[%s963 + $0xc0] sm:$0xff]
        %v989 = vld [vmem:[%s963 + $0xc8] sm:$0xff]
        %v990 = vld [vmem:[%s963 + $0xd0] sm:$0xff]
        %v991 = vld [vmem:[%s963 + $0xd8] sm:$0xff]
        %v992 = vld [vmem:[%s963 + $0xe0] sm:$0xff]
        %v993 = vld [vmem:[%s963 + $0xe8] sm:$0xff]
        %v994 = vld [vmem:[%s963 + $0xf0] sm:$0xff]
        %v995 = vld [vmem:[%s963 + $0xf8] sm:$0xff]
        %s996 = scalar_lea.vmem %s11, %s33
        %v997 = vld [vmem:[%s996] sm:$0x1]
        %v999 = vperm.slane %v997, 0
        %1001 = vmatpush.msra.mxu0 %v979
        %1002 = vmatpush.msra.mxu0 %v978
        %1003 = vmatpush.msra.mxu0 %v977
        %1004 = vmatpush.msra.mxu0 %v976
        %1005 = vmatpush.msra.mxu0 %v975
        %1006 = vmatpush.msra.mxu0 %v974
        %1007 = vmatpush.msra.mxu0 %v973
        %1008 = vmatpush.msra.mxu0 %v972
        %1009 = vmatpush.msra.mxu0 %v971
        %1010 = vmatpush.msra.mxu0 %v970
        %1011 = vmatpush.msra.mxu0 %v969
        %1012 = vmatpush.msra.mxu0 %v968
        %1013 = vmatpush.msra.mxu0 %v967
        %1014 = vmatpush.msra.mxu0 %v966
        %1015 = vmatpush.msra.mxu0 %v965
        %1016 = vmatpush.msra.mxu0 %v964
        %1017 = vmatmul.f32.gmra.mxu0 %v960
        %v1018 = vpop.f32.mrf.mxu0
        %v1019 = vadd.f32 %v999, %v1018
        %1020 = vdwg.mxu0
        %1021 = vmatpush.msra.mxu0 %v995
        %1022 = vmatpush.msra.mxu0 %v994
        %1023 = vmatpush.msra.mxu0 %v993
        %1024 = vmatpush.msra.mxu0 %v992
        %1025 = vmatpush.msra.mxu0 %v991
        %1026 = vmatpush.msra.mxu0 %v990
        %1027 = vmatpush.msra.mxu0 %v989
        %1028 = vmatpush.msra.mxu0 %v988
        %1029 = vmatpush.msra.mxu0 %v987
        %1030 = vmatpush.msra.mxu0 %v986
        %1031 = vmatpush.msra.mxu0 %v985
        %1032 = vmatpush.msra.mxu0 %v984
        %1033 = vmatpush.msra.mxu0 %v983
        %1034 = vmatpush.msra.mxu0 %v982
        %1035 = vmatpush.msra.mxu0 %v981
        %1036 = vmatpush.msra.mxu0 %v980
        %1037 = vmatmul.f32.gmra.mxu0 %v961
        %v1038 = vpop.f32.mrf.mxu0
        %v1039 = vadd.f32 %v1019, %v1038
        %1040 = vdwg.mxu0
        %s1041 = scalar_lea.vmem %s12, %s33
        %v1042 = vld [vmem:[%s1041] sm:$0x1]
        %s1043 = scalar_lea.vmem %s13, %s33
        %v1044 = vld [vmem:[%s1043] sm:$0x1]
        %v1045 = vsel %vm526, %v1039, 0.0
        %1046 = vadd.xlane.f32.xlu0 %v1045
        %v1047 = vpop.xlane.xlu0 %1046
        %v1048 = vmul.f32 %v1047, %v785
        %v1049 = vsub.f32 %v1039, %v1048
        %v1050 = vmul.f32 %v1049, %v1049
        %v1051 = vsel %vm526, %v1050, 0.0
        %1052 = vadd.xlane.f32.xlu0 %v1051
        %v1053 = vpop.xlane.xlu0 %1052
        %v1054 = vmul.f32 %v1053, %v785
        %v1055 = vadd.f32 %v1054, 1e-12
        %v1056 = vrsqrt.pop %v1055
        %v1057 = vmul.f32 %v1056, %v1055
        %v1058 = vmul.f32 %v1057, %v1056
        %v1059 = vmul.f32 0.5, %v1058
        %v1060 = vsub.f32 1.5, %v1059
        %v1061 = vmul.f32 %v1056, %v1060
        %vm1062 = vweird.f32 %v1055
        %vm1063 = vweird.f32 %v1056
        %vm1064 = vmor %vm1062, %vm1063
        %v1065 = vsel %vm1064, %v1056, %v1061
        %v1066 = vmul.f32 %v1049, %v1065
        %v1068 = vperm.slane %v1042, 0
        %v1070 = vmul.f32 %v1066, %v1068
        %v1072 = vperm.slane %v1044, 0
        %v1074 = vadd.f32 %v1070, %v1072
        %v1075 = vadd.f32 %v1074, %v813
        %1076 = vst.msk [vmem:[#allocation2] sm:$0xff] %vm526, %v1075
        %1077 = vst.msk [vmem:[%s483] sm:$0xff] %vm526, %v1075
        %s1078 = sand.u32 %s354, 1
        %s1079 = scalar_lea.sflag [#allocation4], %s1078
        %s1080 = sand.u32 %s354, 1
        %s1081 = smul.addr %s1080, 8
        %s1082 = scalar_lea.vmem [#allocation3], %s1081
        // Predicated region
        $region81: #{tpu_custom_call.1} parent=75 // pred_check
          %p1083 = pneg %p364
        $region82: #{tpu_custom_call.1} parent=75 // pred_check_branch
          %1085 = sbr.rel (%p1083) target = $region84
        $region83: #{tpu_custom_call.1} parent=75 // pred_region
          %1087 = vsyncadd %s1079, 0
          %s1088 = smul.addr %s33, 2
          %s1089 = sadd.s32 %s32, %s1088
          %s1090 = smul.addr %s1089, 8
          %s1091 = scalar_lea.hbm %s14, %s1090
          %s1093 = sshll.u32 %s1082, 4
          %s1094 = int_to_ptr.vmem [resolvable:$true] %s1093
          %s1095 = sshll.u32 %s1091, 4
          %s1096 = int_to_ptr.hbm [resolvable:$true] %s1095
          %1098 = dma.vmem_to_hbm [thread:$0]  %s1094, 128, %s1096, %s1079
        $region84: #{tpu_custom_call.1} parent=75 // pred_fallthru
          _
      $region76: #{tpu_custom_call.1} parent=5 // pred_fallthru
        _
      %p1099 = scmp.le.s32.totalorder 2, %s23
      // Predicated region
      $region85: #{tpu_custom_call.1} parent=5 // pred_check
        %p1100 = pneg %p1099
      $region86: #{tpu_custom_call.1} parent=5 // pred_check_branch
        %1102 = sbr.rel (%p1100) target = $region88
      $region87: #{tpu_custom_call.1} parent=5 // pred_region
        %s1103 = ssub.s32 %s23, 2
        // Predicated region
        $region89: #{tpu_custom_call.1} parent=87 // pred_check
          %p1104 = pneg %p370
        $region90: #{tpu_custom_call.1} parent=87 // pred_check_branch
          %1106 = sbr.rel (%p1104) target = $region92
        $region91: #{tpu_custom_call.1} parent=87 // pred_region
          %s1107 = sand.u32 %s355, 1
          %s1108 = scalar_lea.sflag [#allocation4], %s1107
          %s1109 = sand.u32 %s355, 1
          %s1110 = smul.addr %s1109, 8
          %s1111 = scalar_lea.vmem [#allocation3], %s1110
          %1113 = dma.done %s1108, 128
        $region92: #{tpu_custom_call.1} parent=87 // pred_fallthru
          _
      $region88: #{tpu_custom_call.1} parent=5 // pred_fallthru
        _
    $region6: #{tpu_custom_call.1} parent=1 // loop_footer
      %s27 = sadd.s32 1, %s23
    $region7: #{tpu_custom_call.1} parent=1 // loop_footer_branch
      %22 = sbr.rel target = $region3
    $region8: #{tpu_custom_call.1} parent=1 // loop_exit
      _
    %1114 = vsyncpa [#allocation4], 1
    %s1115 = scalar_lea.sflag [#allocation4], 1
    %1116 = vsyncpa %s1115, 1

</llo_original>
